<compile_context>
chip_gen: v5e
topology: v5e:2x2
jax: 0.10.0
libtpu: 0.0.40
codegen_flags: <defaults>
</compile_context>

<pallas_src>
import jax
import jax.numpy as jnp
from jax import lax
from jax.experimental import pallas as pl
from jax.experimental.pallas import tpu as pltpu


def _round_up(x, m):
    return (x + m - 1) // m * m


# ----------------------------------------------------------------------------
# Fused kernel
# ----------------------------------------------------------------------------
def _edgeconv(x, s_en, d_en, d_ne, wa, wb, b1, w2, b2, w3, b3):
    """One EdgeConv(aggr='add') with nn = Lin -> ReLU -> Lin -> ReLU -> Lin.

    x: (N_pad, C) f32 node features.
    s_en, d_en: (E_pad, N_pad) bf16 one-hot of src / dst (all-zero rows for padding).
    d_ne:       (N_pad, E_pad) bf16 one-hot scatter matrix (all-zero cols for padding).
    Weights are bf16, biases are f32 (1, H).
    """
    x16 = x.astype(jnp.bfloat16)
    # Node-side first Linear (MXU over N rows, bias folded into the dst-side term):
    #   ef @ W1 = x_i @ (W1[:C]-W1[C:]) + x_j @ W1[C:]
    xa = jnp.dot(x16, wa, preferred_element_type=jnp.float32) + b1   # dst side (+bias)
    xb = jnp.dot(x16, wb, preferred_element_type=jnp.float32)        # src side

    # Vectorized gather on the MXU: eh[e] = relu(xa[dst[e]] + xb[src[e]]).
    eh = jnp.maximum(
        jnp.dot(d_en, xa.astype(jnp.bfloat16), preferred_element_type=jnp.float32)
        + jnp.dot(s_en, xb.astype(jnp.bfloat16), preferred_element_type=jnp.float32),
        0.0)

    # Edge-batched tail of the MLP: Linear -> ReLU -> Linear (no final ReLU).
    h = jnp.maximum(
        jnp.dot(eh.astype(jnp.bfloat16), w2, preferred_element_type=jnp.float32) + b2,
        0.0)
    m = jnp.dot(h.astype(jnp.bfloat16), w3, preferred_element_type=jnp.float32) + b3

    # Vectorized scatter-add (aggr='add') on the MXU.  Padded edges have all-zero
    # columns in d_ne, so their (bias-only, nonzero) messages never land anywhere.
    return jnp.dot(d_ne, m.astype(jnp.bfloat16), preferred_element_type=jnp.float32)


def net_kernel(src_col_ref, dst_col_ref, dst_row_ref, x_ref, pool_ref,
               wa1, wb1, b11, w21, b21, w31, b31,
               wa2, wb2, b12, w22, b22, w32, b32,
               wa3, wb3, b13, w23, b23, w33, b33,
               wl2, bl2, wl3, bl3,
               out_ref):
    e_pad = src_col_ref.shape[0]
    n_pad = x_ref.shape[0]

    # Build the gather / scatter one-hots once; reused by all three layers.
    # Padded edge indices are -1 and never match a node id.
    node_iota_en = lax.broadcasted_iota(jnp.int32, (e_pad, n_pad), 1)
    node_iota_ne = lax.broadcasted_iota(jnp.int32, (n_pad, e_pad), 0)
    s_en = (src_col_ref[...] == node_iota_en).astype(jnp.bfloat16)   # (E_pad, N_pad)
    d_en = (dst_col_ref[...] == node_iota_en).astype(jnp.bfloat16)   # (E_pad, N_pad)
    d_ne = (dst_row_ref[...] == node_iota_ne).astype(jnp.bfloat16)   # (N_pad, E_pad)

    x1 = _edgeconv(x_ref[...], s_en, d_en, d_ne,
                   wa1[...], wb1[...], b11[...], w21[...], b21[...], w31[...], b31[...])
    x2 = _edgeconv(x1, s_en, d_en, d_ne,
                   wa2[...], wb2[...], b12[...], w22[...], b22[...], w32[...], b32[...])
    x3 = _edgeconv(x2, s_en, d_en, d_ne,
                   wa3[...], wb3[...], b13[...], w23[...], b23[...], w33[...], b33[...])

    # global_mean_pool via a tiny (B, N_pad) mean matrix (padded nodes get 0 weight).
    g = jnp.dot(pool_ref[...], x3, preferred_element_type=jnp.float32)
    # TODO(synk): F.dropout(p=0.1) -> identity (deterministic inference).
    g = jnp.dot(g, wl2[...], preferred_element_type=jnp.float32) + bl2[...]
    # lin3 (64 -> 1) as a VPU broadcast-multiply + lane reduction.
    y = jnp.sum(g * wl3[...], axis=-1, keepdims=True) + bl3[...]
    out_ref[...] = jax.nn.sigmoid(y)


# ----------------------------------------------------------------------------
# Wrapper
# ----------------------------------------------------------------------------
def net_forward(x, src, dst, pool, params):
    n_nodes, c_in = x.shape
    n_edges = int(src.shape[0])
    n_graphs = pool.shape[0]

    p1 = params["conv1"]
    p2 = params["conv2"]
    p3 = params["conv3"]
    ph = params["head"]

    # Pad node rows / edge rows / input channels to 16 (bf16 sublane packing).
    # Zero padding is exact: padded nodes have pool weight 0 and are never indexed,
    # padded edges use index -1 (all-zero one-hot rows/columns).
    n_pad = _round_up(n_nodes, 16)
    e_pad = _round_up(max(n_edges, 1), 16)
    c_pad = _round_up(c_in, 16)
    if n_pad != n_nodes:
        x = jnp.pad(x, ((0, n_pad - n_nodes), (0, 0)))
        pool = jnp.pad(pool, ((0, 0), (0, n_pad - n_nodes)))
    if c_pad != c_in:
        x = jnp.pad(x, ((0, 0), (0, c_pad - c_in)))
        p1 = dict(p1,
                  wa=jnp.pad(p1["wa"], ((0, c_pad - c_in), (0, 0))),
                  wb=jnp.pad(p1["wb"], ((0, c_pad - c_in), (0, 0))))

    src_p = jnp.pad(src.astype(jnp.int32), ((0, e_pad - n_edges),), constant_values=-1)
    dst_p = jnp.pad(dst.astype(jnp.int32), ((0, e_pad - n_edges),), constant_values=-1)
    src_col = src_p.reshape(e_pad, 1)
    dst_col = dst_p.reshape(e_pad, 1)
    dst_row = dst_p.reshape(1, e_pad)

    # Stage EdgeConv weights as bf16 MXU operands; biases (and the head) stay f32.
    def bf16(w):
        return w.astype(jnp.bfloat16)

    vmem = pl.BlockSpec(memory_space=pltpu.MemorySpace.VMEM)

    return pl.pallas_call(
        net_kernel,
        out_shape=jax.ShapeDtypeStruct((n_graphs, 1), jnp.float32),
        in_specs=[vmem] * 30,
        out_specs=vmem,
    )(src_col, dst_col, dst_row, x, pool,
      bf16(p1["wa"]), bf16(p1["wb"]), p1["b1"], bf16(p1["w2"]), p1["b2"], bf16(p1["w3"]), p1["b3"],
      bf16(p2["wa"]), bf16(p2["wb"]), p2["b1"], bf16(p2["w2"]), p2["b2"], bf16(p2["w3"]), p2["b3"],
      bf16(p3["wa"]), bf16(p3["wb"]), p3["b1"], bf16(p3["w2"]), p3["b2"], bf16(p3["w3"]), p3["b3"],
      ph["w2"], ph["b2"], ph["w3"], ph["b3"])


# ----------------------------------------------------------------------------
# Deterministic parameter construction (PyTorch Linear default init)
# ----------------------------------------------------------------------------
def _init_linear(key, fan_in, fan_out):
    kw, kb = jax.random.split(key)
    bound = 1.0 / jnp.sqrt(jnp.float32(fan_in))
    w = jax.random.uniform(kw, (fan_in, fan_out), jnp.float32, -bound, bound)
    b = jax.random.uniform(kb, (1, fan_out), jnp.float32, -bound, bound)
    return w, b


def _init_edgeconv(key, c_in, hidden):
    k1, k2, k3 = jax.random.split(key, 3)
    w1, b1 = _init_linear(k1, 2 * c_in, hidden)   # Linear(2C, H)
    w2, b2 = _init_linear(k2, hidden, hidden)     # Linear(H, H)
    w3, b3 = _init_linear(k3, hidden, hidden)     # Linear(H, H)
    # ef @ W1 = x_i @ (W1[:C] - W1[C:]) + x_j @ W1[C:]   (ef = [x_i, x_j - x_i])
    wa = w1[:c_in] - w1[c_in:]
    wb = w1[c_in:]
    return dict(wa=wa, wb=wb, b1=b1, w2=w2, b2=b2, w3=w3, b3=b3)


def make_params(key):
    k1, k2, k3, k4, k5 = jax.random.split(key, 5)
    params = {
        "conv1": _init_edgeconv(k1, 3, 64),
        "conv2": _init_edgeconv(k2, 64, 128),
        "conv3": _init_edgeconv(k3, 128, 256),
    }
    # NOTE: lin1 (256 -> 128) is defined in the reference module but never used.
    w2, b2 = _init_linear(k4, 256, 64)            # lin2
    w3, b3 = _init_linear(k5, 64, 1)              # lin3
    params["head"] = dict(w2=w2, b2=b2, w3=w3.T, b3=b3)  # w3 stored as (1, 64)
    return params


# ----------------------------------------------------------------------------
# Main
# ----------------------------------------------------------------------------
if __name__ == "__main__":
    key = jax.random.PRNGKey(0)
    k_x, k_p = jax.random.split(key)

    # Two graphs of 8 nodes each, 3 features per node.
    nodes_per_graph = 8
    n_graphs = 2
    n_nodes = nodes_per_graph * n_graphs
    x = jax.random.normal(k_x, (n_nodes, 3), jnp.float32)

    # Bidirectional chain edges inside each graph.
    src_list, dst_list, batch_list = [], [], []
    for g in range(n_graphs):
        base = g * nodes_per_graph
        batch_list += [g] * nodes_per_graph
        for i in range(nodes_per_graph - 1):
            src_list += [base + i, base + i + 1]
            dst_list += [base + i + 1, base + i]
    src = jnp.array(src_list, dtype=jnp.int32)
    dst = jnp.array(dst_list, dtype=jnp.int32)
    batch = jnp.array(batch_list, dtype=jnp.int32)

    # Mean-pool matrix (B, N).
    onehot = (batch[None, :] == jnp.arange(n_graphs)[:, None]).astype(jnp.float32)
    pool = onehot / jnp.sum(onehot, axis=1, keepdims=True)

    params = make_params(k_p)

    fwd = jax.jit(net_forward)
    out = jax.block_until_ready(fwd(x, src, dst, pool, params))
    assert out.shape == (n_graphs, 1)
    assert bool(jnp.all(jnp.isfinite(out)))
    print("KERNEL_OK")
</pallas_src>

<mosaic_0001>
module attributes {stable_mosaic.version = 11 : i64} {
  func.func @net_kernel(%arg0: memref<32x1xi32, #tpu.memory_space<vmem>>, %arg1: memref<32x1xi32, #tpu.memory_space<vmem>>, %arg2: memref<1x32xi32, #tpu.memory_space<vmem>>, %arg3: memref<16x16xf32, #tpu.memory_space<vmem>>, %arg4: memref<2x16xf32, #tpu.memory_space<vmem>>, %arg5: memref<16x64xbf16, #tpu.memory_space<vmem>>, %arg6: memref<16x64xbf16, #tpu.memory_space<vmem>>, %arg7: memref<1x64xf32, #tpu.memory_space<vmem>>, %arg8: memref<64x64xbf16, #tpu.memory_space<vmem>>, %arg9: memref<1x64xf32, #tpu.memory_space<vmem>>, %arg10: memref<64x64xbf16, #tpu.memory_space<vmem>>, %arg11: memref<1x64xf32, #tpu.memory_space<vmem>>, %arg12: memref<64x128xbf16, #tpu.memory_space<vmem>>, %arg13: memref<64x128xbf16, #tpu.memory_space<vmem>>, %arg14: memref<1x128xf32, #tpu.memory_space<vmem>>, %arg15: memref<128x128xbf16, #tpu.memory_space<vmem>>, %arg16: memref<1x128xf32, #tpu.memory_space<vmem>>, %arg17: memref<128x128xbf16, #tpu.memory_space<vmem>>, %arg18: memref<1x128xf32, #tpu.memory_space<vmem>>, %arg19: memref<128x256xbf16, #tpu.memory_space<vmem>>, %arg20: memref<128x256xbf16, #tpu.memory_space<vmem>>, %arg21: memref<1x256xf32, #tpu.memory_space<vmem>>, %arg22: memref<256x256xbf16, #tpu.memory_space<vmem>>, %arg23: memref<1x256xf32, #tpu.memory_space<vmem>>, %arg24: memref<256x256xbf16, #tpu.memory_space<vmem>>, %arg25: memref<1x256xf32, #tpu.memory_space<vmem>>, %arg26: memref<256x64xf32, #tpu.memory_space<vmem>>, %arg27: memref<1x64xf32, #tpu.memory_space<vmem>>, %arg28: memref<1x64xf32, #tpu.memory_space<vmem>>, %arg29: memref<1x1xf32, #tpu.memory_space<vmem>>, %arg30: memref<2x1xf32, #tpu.memory_space<vmem>>) attributes {dimension_semantics = [], scalar_prefetch = 0 : i64, scratch_operands = 0 : i64, tpu.core_type = #tpu.core_type<tc>} {
    %0 = tpu.iota {dimensions = array<i32: 1>} : vector<32x16xi32>
    %1 = tpu.iota {dimensions = array<i32: 0>} : vector<16x32xi32>
    %c0 = arith.constant 0 : index
    %c0_0 = arith.constant 0 : index
    %2 = vector.load %arg0[%c0, %c0_0] : memref<32x1xi32, #tpu.memory_space<vmem>>, vector<32x1xi32>
    %3 = vector.broadcast %2 : vector<32x1xi32> to vector<32x16xi32>
    %4 = arith.cmpi eq, %3, %0 : vector<32x16xi32>
    %5 = arith.extui %4 : vector<32x16xi1> to vector<32x16xi32>
    %6 = arith.sitofp %5 : vector<32x16xi32> to vector<32x16xf32>
    %7 = arith.truncf %6 : vector<32x16xf32> to vector<32x16xbf16>
    %c0_1 = arith.constant 0 : index
    %c0_2 = arith.constant 0 : index
    %8 = vector.load %arg1[%c0_1, %c0_2] : memref<32x1xi32, #tpu.memory_space<vmem>>, vector<32x1xi32>
    %9 = vector.broadcast %8 : vector<32x1xi32> to vector<32x16xi32>
    %10 = arith.cmpi eq, %9, %0 : vector<32x16xi32>
    %11 = arith.extui %10 : vector<32x16xi1> to vector<32x16xi32>
    %12 = arith.sitofp %11 : vector<32x16xi32> to vector<32x16xf32>
    %13 = arith.truncf %12 : vector<32x16xf32> to vector<32x16xbf16>
    %c0_3 = arith.constant 0 : index
    %c0_4 = arith.constant 0 : index
    %14 = vector.load %arg2[%c0_3, %c0_4] : memref<1x32xi32, #tpu.memory_space<vmem>>, vector<1x32xi32>
    %15 = vector.broadcast %14 : vector<1x32xi32> to vector<16x32xi32>
    %16 = arith.cmpi eq, %15, %1 : vector<16x32xi32>
    %17 = arith.extui %16 : vector<16x32xi1> to vector<16x32xi32>
    %18 = arith.sitofp %17 : vector<16x32xi32> to vector<16x32xf32>
    %19 = arith.truncf %18 : vector<16x32xf32> to vector<16x32xbf16>
    %c0_5 = arith.constant 0 : index
    %c0_6 = arith.constant 0 : index
    %20 = vector.load %arg3[%c0_5, %c0_6] : memref<16x16xf32, #tpu.memory_space<vmem>>, vector<16x16xf32>
    %c0_7 = arith.constant 0 : index
    %c0_8 = arith.constant 0 : index
    %21 = vector.load %arg5[%c0_7, %c0_8] : memref<16x64xbf16, #tpu.memory_space<vmem>>, vector<16x64xbf16>
    %c0_9 = arith.constant 0 : index
    %c0_10 = arith.constant 0 : index
    %22 = vector.load %arg6[%c0_9, %c0_10] : memref<16x64xbf16, #tpu.memory_space<vmem>>, vector<16x64xbf16>
    %c0_11 = arith.constant 0 : index
    %c0_12 = arith.constant 0 : index
    %23 = vector.load %arg7[%c0_11, %c0_12] : memref<1x64xf32, #tpu.memory_space<vmem>>, vector<1x64xf32>
    %c0_13 = arith.constant 0 : index
    %c0_14 = arith.constant 0 : index
    %24 = vector.load %arg8[%c0_13, %c0_14] : memref<64x64xbf16, #tpu.memory_space<vmem>>, vector<64x64xbf16>
    %c0_15 = arith.constant 0 : index
    %c0_16 = arith.constant 0 : index
    %25 = vector.load %arg9[%c0_15, %c0_16] : memref<1x64xf32, #tpu.memory_space<vmem>>, vector<1x64xf32>
    %c0_17 = arith.constant 0 : index
    %c0_18 = arith.constant 0 : index
    %26 = vector.load %arg10[%c0_17, %c0_18] : memref<64x64xbf16, #tpu.memory_space<vmem>>, vector<64x64xbf16>
    %c0_19 = arith.constant 0 : index
    %c0_20 = arith.constant 0 : index
    %27 = vector.load %arg11[%c0_19, %c0_20] : memref<1x64xf32, #tpu.memory_space<vmem>>, vector<1x64xf32>
    %28 = arith.truncf %20 : vector<16x16xf32> to vector<16x16xbf16>
    %cst = arith.constant dense<0.000000e+00> : vector<16x64xf32>
    %29 = tpu.matmul %28, %21, %cst {dimension_numbers = #tpu.dot_dimension_numbers<[1], [0], [0], [1], [0, 0, 1, 1], [], []>} : vector<16x16xbf16>, vector<16x64xbf16>, vector<16x64xf32> -> vector<16x64xf32>
    %30 = vector.broadcast %23 : vector<1x64xf32> to vector<16x64xf32>
    %31 = arith.addf %29, %30 : vector<16x64xf32>
    %cst_21 = arith.constant dense<0.000000e+00> : vector<16x64xf32>
    %32 = tpu.matmul %28, %22, %cst_21 {dimension_numbers = #tpu.dot_dimension_numbers<[1], [0], [0], [1], [0, 0, 1, 1], [], []>} : vector<16x16xbf16>, vector<16x64xbf16>, vector<16x64xf32> -> vector<16x64xf32>
    %33 = arith.truncf %31 : vector<16x64xf32> to vector<16x64xbf16>
    %cst_22 = arith.constant dense<0.000000e+00> : vector<32x64xf32>
    %34 = tpu.matmul %13, %33, %cst_22 {dimension_numbers = #tpu.dot_dimension_numbers<[1], [0], [0], [1], [0, 0, 1, 1], [], []>} : vector<32x16xbf16>, vector<16x64xbf16>, vector<32x64xf32> -> vector<32x64xf32>
    %35 = arith.truncf %32 : vector<16x64xf32> to vector<16x64xbf16>
    %cst_23 = arith.constant dense<0.000000e+00> : vector<32x64xf32>
    %36 = tpu.matmul %7, %35, %cst_23 {dimension_numbers = #tpu.dot_dimension_numbers<[1], [0], [0], [1], [0, 0, 1, 1], [], []>} : vector<32x16xbf16>, vector<16x64xbf16>, vector<32x64xf32> -> vector<32x64xf32>
    %37 = arith.addf %34, %36 : vector<32x64xf32>
    %cst_24 = arith.constant 0.000000e+00 : f32
    %38 = vector.broadcast %cst_24 : f32 to vector<32x64xf32>
    %39 = arith.maximumf %37, %38 : vector<32x64xf32>
    %40 = arith.truncf %39 : vector<32x64xf32> to vector<32x64xbf16>
    %cst_25 = arith.constant dense<0.000000e+00> : vector<32x64xf32>
    %41 = tpu.matmul %40, %24, %cst_25 {dimension_numbers = #tpu.dot_dimension_numbers<[1], [0], [0], [1], [0, 0, 1, 1], [], []>} : vector<32x64xbf16>, vector<64x64xbf16>, vector<32x64xf32> -> vector<32x64xf32>
    %42 = vector.broadcast %25 : vector<1x64xf32> to vector<32x64xf32>
    %43 = arith.addf %41, %42 : vector<32x64xf32>
    %cst_26 = arith.constant 0.000000e+00 : f32
    %44 = vector.broadcast %cst_26 : f32 to vector<32x64xf32>
    %45 = arith.maximumf %43, %44 : vector<32x64xf32>
    %46 = arith.truncf %45 : vector<32x64xf32> to vector<32x64xbf16>
    %cst_27 = arith.constant dense<0.000000e+00> : vector<32x64xf32>
    %47 = tpu.matmul %46, %26, %cst_27 {dimension_numbers = #tpu.dot_dimension_numbers<[1], [0], [0], [1], [0, 0, 1, 1], [], []>} : vector<32x64xbf16>, vector<64x64xbf16>, vector<32x64xf32> -> vector<32x64xf32>
    %48 = vector.broadcast %27 : vector<1x64xf32> to vector<32x64xf32>
    %49 = arith.addf %47, %48 : vector<32x64xf32>
    %50 = arith.truncf %49 : vector<32x64xf32> to vector<32x64xbf16>
    %cst_28 = arith.constant dense<0.000000e+00> : vector<16x64xf32>
    %51 = tpu.matmul %19, %50, %cst_28 {dimension_numbers = #tpu.dot_dimension_numbers<[1], [0], [0], [1], [0, 0, 1, 1], [], []>} : vector<16x32xbf16>, vector<32x64xbf16>, vector<16x64xf32> -> vector<16x64xf32>
    %c0_29 = arith.constant 0 : index
    %c0_30 = arith.constant 0 : index
    %52 = vector.load %arg12[%c0_29, %c0_30] : memref<64x128xbf16, #tpu.memory_space<vmem>>, vector<64x128xbf16>
    %c0_31 = arith.constant 0 : index
    %c0_32 = arith.constant 0 : index
    %53 = vector.load %arg13[%c0_31, %c0_32] : memref<64x128xbf16, #tpu.memory_space<vmem>>, vector<64x128xbf16>
    %c0_33 = arith.constant 0 : index
    %c0_34 = arith.constant 0 : index
    %54 = vector.load %arg14[%c0_33, %c0_34] : memref<1x128xf32, #tpu.memory_space<vmem>>, vector<1x128xf32>
    %c0_35 = arith.constant 0 : index
    %c0_36 = arith.constant 0 : index
    %55 = vector.load %arg15[%c0_35, %c0_36] : memref<128x128xbf16, #tpu.memory_space<vmem>>, vector<128x128xbf16>
    %c0_37 = arith.constant 0 : index
    %c0_38 = arith.constant 0 : index
    %56 = vector.load %arg16[%c0_37, %c0_38] : memref<1x128xf32, #tpu.memory_space<vmem>>, vector<1x128xf32>
    %c0_39 = arith.constant 0 : index
    %c0_40 = arith.constant 0 : index
    %57 = vector.load %arg17[%c0_39, %c0_40] : memref<128x128xbf16, #tpu.memory_space<vmem>>, vector<128x128xbf16>
    %c0_41 = arith.constant 0 : index
    %c0_42 = arith.constant 0 : index
    %58 = vector.load %arg18[%c0_41, %c0_42] : memref<1x128xf32, #tpu.memory_space<vmem>>, vector<1x128xf32>
    %59 = arith.truncf %51 : vector<16x64xf32> to vector<16x64xbf16>
    %cst_43 = arith.constant dense<0.000000e+00> : vector<16x128xf32>
    %60 = tpu.matmul %59, %52, %cst_43 {dimension_numbers = #tpu.dot_dimension_numbers<[1], [0], [0], [1], [0, 0, 1, 1], [], []>} : vector<16x64xbf16>, vector<64x128xbf16>, vector<16x128xf32> -> vector<16x128xf32>
    %61 = vector.broadcast %54 : vector<1x128xf32> to vector<16x128xf32>
    %62 = arith.addf %60, %61 : vector<16x128xf32>
    %cst_44 = arith.constant dense<0.000000e+00> : vector<16x128xf32>
    %63 = tpu.matmul %59, %53, %cst_44 {dimension_numbers = #tpu.dot_dimension_numbers<[1], [0], [0], [1], [0, 0, 1, 1], [], []>} : vector<16x64xbf16>, vector<64x128xbf16>, vector<16x128xf32> -> vector<16x128xf32>
    %64 = arith.truncf %62 : vector<16x128xf32> to vector<16x128xbf16>
    %cst_45 = arith.constant dense<0.000000e+00> : vector<32x128xf32>
    %65 = tpu.matmul %13, %64, %cst_45 {dimension_numbers = #tpu.dot_dimension_numbers<[1], [0], [0], [1], [0, 0, 1, 1], [], []>} : vector<32x16xbf16>, vector<16x128xbf16>, vector<32x128xf32> -> vector<32x128xf32>
    %66 = arith.truncf %63 : vector<16x128xf32> to vector<16x128xbf16>
    %cst_46 = arith.constant dense<0.000000e+00> : vector<32x128xf32>
    %67 = tpu.matmul %7, %66, %cst_46 {dimension_numbers = #tpu.dot_dimension_numbers<[1], [0], [0], [1], [0, 0, 1, 1], [], []>} : vector<32x16xbf16>, vector<16x128xbf16>, vector<32x128xf32> -> vector<32x128xf32>
    %68 = arith.addf %65, %67 : vector<32x128xf32>
    %cst_47 = arith.constant 0.000000e+00 : f32
    %69 = vector.broadcast %cst_47 : f32 to vector<32x128xf32>
    %70 = arith.maximumf %68, %69 : vector<32x128xf32>
    %71 = arith.truncf %70 : vector<32x128xf32> to vector<32x128xbf16>
    %cst_48 = arith.constant dense<0.000000e+00> : vector<32x128xf32>
    %72 = tpu.matmul %71, %55, %cst_48 {dimension_numbers = #tpu.dot_dimension_numbers<[1], [0], [0], [1], [0, 0, 1, 1], [], []>} : vector<32x128xbf16>, vector<128x128xbf16>, vector<32x128xf32> -> vector<32x128xf32>
    %73 = vector.broadcast %56 : vector<1x128xf32> to vector<32x128xf32>
    %74 = arith.addf %72, %73 : vector<32x128xf32>
    %cst_49 = arith.constant 0.000000e+00 : f32
    %75 = vector.broadcast %cst_49 : f32 to vector<32x128xf32>
    %76 = arith.maximumf %74, %75 : vector<32x128xf32>
    %77 = arith.truncf %76 : vector<32x128xf32> to vector<32x128xbf16>
    %cst_50 = arith.constant dense<0.000000e+00> : vector<32x128xf32>
    %78 = tpu.matmul %77, %57, %cst_50 {dimension_numbers = #tpu.dot_dimension_numbers<[1], [0], [0], [1], [0, 0, 1, 1], [], []>} : vector<32x128xbf16>, vector<128x128xbf16>, vector<32x128xf32> -> vector<32x128xf32>
    %79 = vector.broadcast %58 : vector<1x128xf32> to vector<32x128xf32>
    %80 = arith.addf %78, %79 : vector<32x128xf32>
    %81 = arith.truncf %80 : vector<32x128xf32> to vector<32x128xbf16>
    %cst_51 = arith.constant dense<0.000000e+00> : vector<16x128xf32>
    %82 = tpu.matmul %19, %81, %cst_51 {dimension_numbers = #tpu.dot_dimension_numbers<[1], [0], [0], [1], [0, 0, 1, 1], [], []>} : vector<16x32xbf16>, vector<32x128xbf16>, vector<16x128xf32> -> vector<16x128xf32>
    %c0_52 = arith.constant 0 : index
    %c0_53 = arith.constant 0 : index
    %83 = vector.load %arg19[%c0_52, %c0_53] : memref<128x256xbf16, #tpu.memory_space<vmem>>, vector<128x256xbf16>
    %c0_54 = arith.constant 0 : index
    %c0_55 = arith.constant 0 : index
    %84 = vector.load %arg20[%c0_54, %c0_55] : memref<128x256xbf16, #tpu.memory_space<vmem>>, vector<128x256xbf16>
    %c0_56 = arith.constant 0 : index
    %c0_57 = arith.constant 0 : index
    %85 = vector.load %arg21[%c0_56, %c0_57] : memref<1x256xf32, #tpu.memory_space<vmem>>, vector<1x256xf32>
    %c0_58 = arith.constant 0 : index
    %c0_59 = arith.constant 0 : index
    %86 = vector.load %arg22[%c0_58, %c0_59] : memref<256x256xbf16, #tpu.memory_space<vmem>>, vector<256x256xbf16>
    %c0_60 = arith.constant 0 : index
    %c0_61 = arith.constant 0 : index
    %87 = vector.load %arg23[%c0_60, %c0_61] : memref<1x256xf32, #tpu.memory_space<vmem>>, vector<1x256xf32>
    %c0_62 = arith.constant 0 : index
    %c0_63 = arith.constant 0 : index
    %88 = vector.load %arg24[%c0_62, %c0_63] : memref<256x256xbf16, #tpu.memory_space<vmem>>, vector<256x256xbf16>
    %c0_64 = arith.constant 0 : index
    %c0_65 = arith.constant 0 : index
    %89 = vector.load %arg25[%c0_64, %c0_65] : memref<1x256xf32, #tpu.memory_space<vmem>>, vector<1x256xf32>
    %90 = arith.truncf %82 : vector<16x128xf32> to vector<16x128xbf16>
    %cst_66 = arith.constant dense<0.000000e+00> : vector<16x256xf32>
    %91 = tpu.matmul %90, %83, %cst_66 {dimension_numbers = #tpu.dot_dimension_numbers<[1], [0], [0], [1], [0, 0, 1, 1], [], []>} : vector<16x128xbf16>, vector<128x256xbf16>, vector<16x256xf32> -> vector<16x256xf32>
    %92 = vector.broadcast %85 : vector<1x256xf32> to vector<16x256xf32>
    %93 = arith.addf %91, %92 : vector<16x256xf32>
    %cst_67 = arith.constant dense<0.000000e+00> : vector<16x256xf32>
    %94 = tpu.matmul %90, %84, %cst_67 {dimension_numbers = #tpu.dot_dimension_numbers<[1], [0], [0], [1], [0, 0, 1, 1], [], []>} : vector<16x128xbf16>, vector<128x256xbf16>, vector<16x256xf32> -> vector<16x256xf32>
    %95 = arith.truncf %93 : vector<16x256xf32> to vector<16x256xbf16>
    %cst_68 = arith.constant dense<0.000000e+00> : vector<32x256xf32>
    %96 = tpu.matmul %13, %95, %cst_68 {dimension_numbers = #tpu.dot_dimension_numbers<[1], [0], [0], [1], [0, 0, 1, 1], [], []>} : vector<32x16xbf16>, vector<16x256xbf16>, vector<32x256xf32> -> vector<32x256xf32>
    %97 = arith.truncf %94 : vector<16x256xf32> to vector<16x256xbf16>
    %cst_69 = arith.constant dense<0.000000e+00> : vector<32x256xf32>
    %98 = tpu.matmul %7, %97, %cst_69 {dimension_numbers = #tpu.dot_dimension_numbers<[1], [0], [0], [1], [0, 0, 1, 1], [], []>} : vector<32x16xbf16>, vector<16x256xbf16>, vector<32x256xf32> -> vector<32x256xf32>
    %99 = arith.addf %96, %98 : vector<32x256xf32>
    %cst_70 = arith.constant 0.000000e+00 : f32
    %100 = vector.broadcast %cst_70 : f32 to vector<32x256xf32>
    %101 = arith.maximumf %99, %100 : vector<32x256xf32>
    %102 = arith.truncf %101 : vector<32x256xf32> to vector<32x256xbf16>
    %cst_71 = arith.constant dense<0.000000e+00> : vector<32x256xf32>
    %103 = tpu.matmul %102, %86, %cst_71 {dimension_numbers = #tpu.dot_dimension_numbers<[1], [0], [0], [1], [0, 0, 1, 1], [], []>} : vector<32x256xbf16>, vector<256x256xbf16>, vector<32x256xf32> -> vector<32x256xf32>
    %104 = vector.broadcast %87 : vector<1x256xf32> to vector<32x256xf32>
    %105 = arith.addf %103, %104 : vector<32x256xf32>
    %cst_72 = arith.constant 0.000000e+00 : f32
    %106 = vector.broadcast %cst_72 : f32 to vector<32x256xf32>
    %107 = arith.maximumf %105, %106 : vector<32x256xf32>
    %108 = arith.truncf %107 : vector<32x256xf32> to vector<32x256xbf16>
    %cst_73 = arith.constant dense<0.000000e+00> : vector<32x256xf32>
    %109 = tpu.matmul %108, %88, %cst_73 {dimension_numbers = #tpu.dot_dimension_numbers<[1], [0], [0], [1], [0, 0, 1, 1], [], []>} : vector<32x256xbf16>, vector<256x256xbf16>, vector<32x256xf32> -> vector<32x256xf32>
    %110 = vector.broadcast %89 : vector<1x256xf32> to vector<32x256xf32>
    %111 = arith.addf %109, %110 : vector<32x256xf32>
    %112 = arith.truncf %111 : vector<32x256xf32> to vector<32x256xbf16>
    %cst_74 = arith.constant dense<0.000000e+00> : vector<16x256xf32>
    %113 = tpu.matmul %19, %112, %cst_74 {dimension_numbers = #tpu.dot_dimension_numbers<[1], [0], [0], [1], [0, 0, 1, 1], [], []>} : vector<16x32xbf16>, vector<32x256xbf16>, vector<16x256xf32> -> vector<16x256xf32>
    %c0_75 = arith.constant 0 : index
    %c0_76 = arith.constant 0 : index
    %114 = vector.load %arg4[%c0_75, %c0_76] : memref<2x16xf32, #tpu.memory_space<vmem>>, vector<2x16xf32>
    %cst_77 = arith.constant dense<0.000000e+00> : vector<2x256xf32>
    %115 = tpu.matmul %114, %113, %cst_77 {dimension_numbers = #tpu.dot_dimension_numbers<[1], [0], [0], [1], [0, 0, 1, 1], [], []>} : vector<2x16xf32>, vector<16x256xf32>, vector<2x256xf32> -> vector<2x256xf32>
    %c0_78 = arith.constant 0 : index
    %c0_79 = arith.constant 0 : index
    %116 = vector.load %arg26[%c0_78, %c0_79] : memref<256x64xf32, #tpu.memory_space<vmem>>, vector<256x64xf32>
    %cst_80 = arith.constant dense<0.000000e+00> : vector<2x64xf32>
    %117 = tpu.matmul %115, %116, %cst_80 {dimension_numbers = #tpu.dot_dimension_numbers<[1], [0], [0], [1], [0, 0, 1, 1], [], []>} : vector<2x256xf32>, vector<256x64xf32>, vector<2x64xf32> -> vector<2x64xf32>
    %c0_81 = arith.constant 0 : index
    %c0_82 = arith.constant 0 : index
    %118 = vector.load %arg27[%c0_81, %c0_82] : memref<1x64xf32, #tpu.memory_space<vmem>>, vector<1x64xf32>
    %119 = vector.broadcast %118 : vector<1x64xf32> to vector<2x64xf32>
    %120 = arith.addf %117, %119 : vector<2x64xf32>
    %c0_83 = arith.constant 0 : index
    %c0_84 = arith.constant 0 : index
    %121 = vector.load %arg28[%c0_83, %c0_84] : memref<1x64xf32, #tpu.memory_space<vmem>>, vector<1x64xf32>
    %122 = vector.broadcast %121 : vector<1x64xf32> to vector<2x64xf32>
    %123 = arith.mulf %120, %122 : vector<2x64xf32>
    %cst_85 = arith.constant dense<0.000000e+00> : vector<2xf32>
    %124 = vector.multi_reduction <add>, %123, %cst_85 [1] : vector<2x64xf32> to vector<2xf32>
    %125 = vector.shape_cast %124 : vector<2xf32> to vector<2x1xf32>
    %c0_86 = arith.constant 0 : index
    %c0_87 = arith.constant 0 : index
    %126 = vector.load %arg29[%c0_86, %c0_87] : memref<1x1xf32, #tpu.memory_space<vmem>>, vector<1x1xf32>
    %127 = vector.broadcast %126 : vector<1x1xf32> to vector<2x1xf32>
    %128 = arith.addf %125, %127 : vector<2x1xf32>
    %129 = arith.negf %128 : vector<2x1xf32>
    %130 = math.exp %129 : vector<2x1xf32>
    %cst_88 = arith.constant 1.000000e+00 : f32
    %131 = vector.broadcast %cst_88 : f32 to vector<2x1xf32>
    %132 = arith.addf %131, %130 : vector<2x1xf32>
    %133 = arith.divf %131, %132 : vector<2x1xf32>
    %c0_89 = arith.constant 0 : index
    %c0_90 = arith.constant 0 : index
    %134 = vector.load %arg30[%c0_89, %c0_90] : memref<2x1xf32, #tpu.memory_space<vmem>>, vector<2x1xf32>
    tpu.vector_store %arg30[%c0_89, %c0_90], %133 {strides = array<i32>} : memref<2x1xf32, #tpu.memory_space<vmem>>, vector<2x1xf32>,
    return
  }
}

</mosaic_0001>

<llo_original>
// kernel: net_forward.1
$region0: #{net_forward.1}
  #allocation0 [shape = 'u32[]', space=smem, size = 0x4, offset = 0x4, fixed_abs, tag = 'smem constant byte address 0x4 - core index']
  #allocation1 [shape = 'u32[72,128]{1,0:T(1,128)}', space=vmem, size = 0x9000, scoped, tag = 'internal scratch']
  #allocation2 [shape = 'f32[1,1]{1,0:T(1,128)S(1)}', space=vmem, size = 0x200, scoped, tag = 'scoped memory for net_forward.1']
  %s0 = inlined_call_operand.smem [shape: u32[31], index: -1, kind: input, shape index: {}]
  %s1 = sld [smem:[%s0]]
  %s2 = scalar_lea.smem %s0, 1
  %s3 = sld [smem:[%s2]]
  %s4 = scalar_lea.smem %s0, 2
  %s5 = sld [smem:[%s4]]
  %s6 = scalar_lea.smem %s0, 3
  %s7 = sld [smem:[%s6]]
  %s8 = scalar_lea.smem %s0, 4
  %s9 = sld [smem:[%s8]]
  %s10 = scalar_lea.smem %s0, 5
  %s11 = sld [smem:[%s10]]
  %s12 = scalar_lea.smem %s0, 6
  %s13 = sld [smem:[%s12]]
  %s14 = scalar_lea.smem %s0, 7
  %s15 = sld [smem:[%s14]]
  %s16 = scalar_lea.smem %s0, 8
  %s17 = sld [smem:[%s16]]
  %s18 = scalar_lea.smem %s0, 9
  %s19 = sld [smem:[%s18]]
  %s20 = scalar_lea.smem %s0, 10
  %s21 = sld [smem:[%s20]]
  %s22 = scalar_lea.smem %s0, 11
  %s23 = sld [smem:[%s22]]
  %s24 = scalar_lea.smem %s0, 12
  %s25 = sld [smem:[%s24]]
  %s26 = scalar_lea.smem %s0, 13
  %s27 = sld [smem:[%s26]]
  %s28 = scalar_lea.smem %s0, 14
  %s29 = sld [smem:[%s28]]
  %s30 = scalar_lea.smem %s0, 15
  %s31 = sld [smem:[%s30]]
  %s32 = scalar_lea.smem %s0, 16
  %s33 = sld [smem:[%s32]]
  %s34 = scalar_lea.smem %s0, 17
  %s35 = sld [smem:[%s34]]
  %s36 = scalar_lea.smem %s0, 18
  %s37 = sld [smem:[%s36]]
  %s38 = scalar_lea.smem %s0, 19
  %s39 = sld [smem:[%s38]]
  %s40 = scalar_lea.smem %s0, 20
  %s41 = sld [smem:[%s40]]
  %s42 = scalar_lea.smem %s0, 21
  %s43 = sld [smem:[%s42]]
  %s44 = scalar_lea.smem %s0, 22
  %s45 = sld [smem:[%s44]]
  %s46 = scalar_lea.smem %s0, 23
  %s47 = sld [smem:[%s46]]
  %s48 = scalar_lea.smem %s0, 24
  %s49 = sld [smem:[%s48]]
  %s50 = scalar_lea.smem %s0, 25
  %s51 = sld [smem:[%s50]]
  %s52 = scalar_lea.smem %s0, 26
  %s53 = sld [smem:[%s52]]
  %s54 = scalar_lea.smem %s0, 27
  %s55 = sld [smem:[%s54]]
  %s56 = scalar_lea.smem %s0, 28
  %s57 = sld [smem:[%s56]]
  %s58 = scalar_lea.smem %s0, 29
  %s59 = sld [smem:[%s58]]
  %s60 = scalar_lea.smem %s0, 30
  %s61 = sld [smem:[%s60]]
  %s62 = sld [smem:[#allocation0]]
  $region130: #{net_forward.1} parent=0
    _
  %s64 = ssub.s32 1, %s62
  %s65 = scalar_select 0, %s64, %s62
  %v66 = vstv %s59
  %67 = vst [vmem:[#allocation2] sm:$0x1] %v66
  // Predicated region
  $region2: #{net_forward.1} parent=0 // pred_check
    _
  $region3: #{net_forward.1} parent=0 // pred_check_branch
    %69 = sbr.rel (0) target = $region5
  $region4: #{net_forward.1} parent=0 // pred_region
    _
  $region5: #{net_forward.1} parent=0 // pred_fallthru
    _
  // Predicated region
  $region6: #{net_forward.1} parent=0 // pred_check
    _
  $region7: #{net_forward.1} parent=0 // pred_check_branch
    %71 = sbr.rel (0) target = $region9
  $region8: #{net_forward.1} parent=0 // pred_region
    _
  $region9: #{net_forward.1} parent=0 // pred_fallthru
    _
  // Predicated region
  $region10: #{net_forward.1} parent=0 // pred_check
    _
  $region11: #{net_forward.1} parent=0 // pred_check_branch
    %73 = sbr.rel (0) target = $region13
  $region12: #{net_forward.1} parent=0 // pred_region
    _
  $region13: #{net_forward.1} parent=0 // pred_fallthru
    _
  // Predicated region
  $region14: #{net_forward.1} parent=0 // pred_check
    _
  $region15: #{net_forward.1} parent=0 // pred_check_branch
    %75 = sbr.rel (0) target = $region17
  $region16: #{net_forward.1} parent=0 // pred_region
    _
  $region17: #{net_forward.1} parent=0 // pred_fallthru
    _
  // Predicated region
  $region18: #{net_forward.1} parent=0 // pred_check
    _
  $region19: #{net_forward.1} parent=0 // pred_check_branch
    %77 = sbr.rel (0) target = $region21
  $region20: #{net_forward.1} parent=0 // pred_region
    _
  $region21: #{net_forward.1} parent=0 // pred_fallthru
    _
  // Predicated region
  $region22: #{net_forward.1} parent=0 // pred_check
    _
  $region23: #{net_forward.1} parent=0 // pred_check_branch
    %79 = sbr.rel (0) target = $region25
  $region24: #{net_forward.1} parent=0 // pred_region
    _
  $region25: #{net_forward.1} parent=0 // pred_fallthru
    _
  // Predicated region
  $region26: #{net_forward.1} parent=0 // pred_check
    _
  $region27: #{net_forward.1} parent=0 // pred_check_branch
    %81 = sbr.rel (0) target = $region29
  $region28: #{net_forward.1} parent=0 // pred_region
    _
  $region29: #{net_forward.1} parent=0 // pred_fallthru
    _
  // Predicated region
  $region30: #{net_forward.1} parent=0 // pred_check
    _
  $region31: #{net_forward.1} parent=0 // pred_check_branch
    %83 = sbr.rel (0) target = $region33
  $region32: #{net_forward.1} parent=0 // pred_region
    _
  $region33: #{net_forward.1} parent=0 // pred_fallthru
    _
  // Predicated region
  $region34: #{net_forward.1} parent=0 // pred_check
    _
  $region35: #{net_forward.1} parent=0 // pred_check_branch
    %85 = sbr.rel (0) target = $region37
  $region36: #{net_forward.1} parent=0 // pred_region
    _
  $region37: #{net_forward.1} parent=0 // pred_fallthru
    _
  // Predicated region
  $region38: #{net_forward.1} parent=0 // pred_check
    _
  $region39: #{net_forward.1} parent=0 // pred_check_branch
    %87 = sbr.rel (0) target = $region41
  $region40: #{net_forward.1} parent=0 // pred_region
    _
  $region41: #{net_forward.1} parent=0 // pred_fallthru
    _
  // Predicated region
  $region42: #{net_forward.1} parent=0 // pred_check
    _
  $region43: #{net_forward.1} parent=0 // pred_check_branch
    %89 = sbr.rel (0) target = $region45
  $region44: #{net_forward.1} parent=0 // pred_region
    _
  $region45: #{net_forward.1} parent=0 // pred_fallthru
    _
  // Predicated region
  $region46: #{net_forward.1} parent=0 // pred_check
    _
  $region47: #{net_forward.1} parent=0 // pred_check_branch
    %91 = sbr.rel (0) target = $region49
  $region48: #{net_forward.1} parent=0 // pred_region
    _
  $region49: #{net_forward.1} parent=0 // pred_fallthru
    _
  // Predicated region
  $region50: #{net_forward.1} parent=0 // pred_check
    _
  $region51: #{net_forward.1} parent=0 // pred_check_branch
    %93 = sbr.rel (0) target = $region53
  $region52: #{net_forward.1} parent=0 // pred_region
    _
  $region53: #{net_forward.1} parent=0 // pred_fallthru
    _
  // Predicated region
  $region54: #{net_forward.1} parent=0 // pred_check
    _
  $region55: #{net_forward.1} parent=0 // pred_check_branch
    %95 = sbr.rel (0) target = $region57
  $region56: #{net_forward.1} parent=0 // pred_region
    _
  $region57: #{net_forward.1} parent=0 // pred_fallthru
    _
  // Predicated region
  $region58: #{net_forward.1} parent=0 // pred_check
    _
  $region59: #{net_forward.1} parent=0 // pred_check_branch
    %97 = sbr.rel (0) target = $region61
  $region60: #{net_forward.1} parent=0 // pred_region
    _
  $region61: #{net_forward.1} parent=0 // pred_fallthru
    _
  // Predicated region
  $region62: #{net_forward.1} parent=0 // pred_check
    _
  $region63: #{net_forward.1} parent=0 // pred_check_branch
    %99 = sbr.rel (0) target = $region65
  $region64: #{net_forward.1} parent=0 // pred_region
    _
  $region65: #{net_forward.1} parent=0 // pred_fallthru
    _
  // Predicated region
  $region66: #{net_forward.1} parent=0 // pred_check
    _
  $region67: #{net_forward.1} parent=0 // pred_check_branch
    %101 = sbr.rel (0) target = $region69
  $region68: #{net_forward.1} parent=0 // pred_region
    _
  $region69: #{net_forward.1} parent=0 // pred_fallthru
    _
  // Predicated region
  $region70: #{net_forward.1} parent=0 // pred_check
    _
  $region71: #{net_forward.1} parent=0 // pred_check_branch
    %103 = sbr.rel (0) target = $region73
  $region72: #{net_forward.1} parent=0 // pred_region
    _
  $region73: #{net_forward.1} parent=0 // pred_fallthru
    _
  // Predicated region
  $region74: #{net_forward.1} parent=0 // pred_check
    _
  $region75: #{net_forward.1} parent=0 // pred_check_branch
    %105 = sbr.rel (0) target = $region77
  $region76: #{net_forward.1} parent=0 // pred_region
    _
  $region77: #{net_forward.1} parent=0 // pred_fallthru
    _
  // Predicated region
  $region78: #{net_forward.1} parent=0 // pred_check
    _
  $region79: #{net_forward.1} parent=0 // pred_check_branch
    %107 = sbr.rel (0) target = $region81
  $region80: #{net_forward.1} parent=0 // pred_region
    _
  $region81: #{net_forward.1} parent=0 // pred_fallthru
    _
  // Predicated region
  $region82: #{net_forward.1} parent=0 // pred_check
    _
  $region83: #{net_forward.1} parent=0 // pred_check_branch
    %109 = sbr.rel (0) target = $region85
  $region84: #{net_forward.1} parent=0 // pred_region
    _
  $region85: #{net_forward.1} parent=0 // pred_fallthru
    _
  // Predicated region
  $region86: #{net_forward.1} parent=0 // pred_check
    _
  $region87: #{net_forward.1} parent=0 // pred_check_branch
    %111 = sbr.rel (0) target = $region89
  $region88: #{net_forward.1} parent=0 // pred_region
    _
  $region89: #{net_forward.1} parent=0 // pred_fallthru
    _
  // Predicated region
  $region90: #{net_forward.1} parent=0 // pred_check
    _
  $region91: #{net_forward.1} parent=0 // pred_check_branch
    %113 = sbr.rel (0) target = $region93
  $region92: #{net_forward.1} parent=0 // pred_region
    _
  $region93: #{net_forward.1} parent=0 // pred_fallthru
    _
  // Predicated region
  $region94: #{net_forward.1} parent=0 // pred_check
    _
  $region95: #{net_forward.1} parent=0 // pred_check_branch
    %115 = sbr.rel (0) target = $region97
  $region96: #{net_forward.1} parent=0 // pred_region
    _
  $region97: #{net_forward.1} parent=0 // pred_fallthru
    _
  // Predicated region
  $region98: #{net_forward.1} parent=0 // pred_check
    _
  $region99: #{net_forward.1} parent=0 // pred_check_branch
    %117 = sbr.rel (0) target = $region101
  $region100: #{net_forward.1} parent=0 // pred_region
    _
  $region101: #{net_forward.1} parent=0 // pred_fallthru
    _
  // Predicated region
  $region102: #{net_forward.1} parent=0 // pred_check
    _
  $region103: #{net_forward.1} parent=0 // pred_check_branch
    %119 = sbr.rel (0) target = $region105
  $region104: #{net_forward.1} parent=0 // pred_region
    _
  $region105: #{net_forward.1} parent=0 // pred_fallthru
    _
  // Predicated region
  $region106: #{net_forward.1} parent=0 // pred_check
    _
  $region107: #{net_forward.1} parent=0 // pred_check_branch
    %121 = sbr.rel (0) target = $region109
  $region108: #{net_forward.1} parent=0 // pred_region
    _
  $region109: #{net_forward.1} parent=0 // pred_fallthru
    _
  // Predicated region
  $region110: #{net_forward.1} parent=0 // pred_check
    _
  $region111: #{net_forward.1} parent=0 // pred_check_branch
    %123 = sbr.rel (0) target = $region113
  $region112: #{net_forward.1} parent=0 // pred_region
    _
  $region113: #{net_forward.1} parent=0 // pred_fallthru
    _
  // Predicated region
  $region114: #{net_forward.1} parent=0 // pred_check
    _
  $region115: #{net_forward.1} parent=0 // pred_check_branch
    %125 = sbr.rel (0) target = $region117
  $region116: #{net_forward.1} parent=0 // pred_region
    _
  $region117: #{net_forward.1} parent=0 // pred_fallthru
    _
  // Predicated region
  $region118: #{net_forward.1} parent=0 // pred_check
    _
  $region119: #{net_forward.1} parent=0 // pred_check_branch
    %127 = sbr.rel (0) target = $region121
  $region120: #{net_forward.1} parent=0 // pred_region
    _
  $region121: #{net_forward.1} parent=0 // pred_fallthru
    _
  %v129 = vlaneseq
  %v130 = vand.u32 %v129, 127
  %v131 = vlaneseq
  %v132 = vshrl.u32 %v131, 7
  %v133 = vadd.s32 %v132, 8
  %v134 = vld [vmem:[%s1] sm:$0xff]
  %v135 = vld [vmem:[%s1 + $0x8] sm:$0xff]
  %v136 = vld [vmem:[%s1 + $0x10] sm:$0xff]
  %v137 = vld [vmem:[%s1 + $0x18] sm:$0xff]
  %138 = vset.pattern.permute.xlu0 0
  %139 = vperm.xlu0 %138, %v134
  %v140 = vpop.permute.xlu0 %139
  %141 = vset.pattern.permute.xlu0 0
  %142 = vperm.xlu0 %141, %v135
  %v143 = vpop.permute.xlu0 %142
  %144 = vset.pattern.permute.xlu0 0
  %145 = vperm.xlu0 %144, %v136
  %v146 = vpop.permute.xlu0 %145
  %147 = vset.pattern.permute.xlu0 0
  %148 = vperm.xlu0 %147, %v137
  %v149 = vpop.permute.xlu0 %148
  %vm150 = vcmp.eq.s32.totalorder %v140, %v130
  %vm151 = vcmp.eq.s32.totalorder %v143, %v130
  %vm152 = vcmp.eq.s32.totalorder %v146, %v130
  %vm153 = vcmp.eq.s32.totalorder %v149, %v130
  %v154 = vsel %vm150, 1, 0
  %v155 = vsel %vm151, 1, 0
  %v156 = vsel %vm152, 1, 0
  %v157 = vsel %vm153, 1, 0
  %v158 = vcvt.s32.f32 %v154
  %v159 = vcvt.s32.f32 %v155
  %v160 = vcvt.s32.f32 %v156
  %v161 = vcvt.s32.f32 %v157
  %v162 = vpack.c.bf16 %v159, %v158
  %v163 = vpack.c.bf16 %v161, %v160
  %v164 = vld [vmem:[%s3] sm:$0xff]
  %v165 = vld [vmem:[%s3 + $0x8] sm:$0xff]
  %v166 = vld [vmem:[%s3 + $0x10] sm:$0xff]
  %v167 = vld [vmem:[%s3 + $0x18] sm:$0xff]
  %168 = vset.pattern.permute.xlu0 0
  %169 = vperm.xlu0 %168, %v164
  %v170 = vpop.permute.xlu0 %169
  %171 = vset.pattern.permute.xlu0 0
  %172 = vperm.xlu0 %171, %v165
  %v173 = vpop.permute.xlu0 %172
  %174 = vset.pattern.permute.xlu0 0
  %175 = vperm.xlu0 %174, %v166
  %v176 = vpop.permute.xlu0 %175
  %177 = vset.pattern.permute.xlu0 0
  %178 = vperm.xlu0 %177, %v167
  %v179 = vpop.permute.xlu0 %178
  %vm180 = vcmp.eq.s32.totalorder %v170, %v130
  %vm181 = vcmp.eq.s32.totalorder %v173, %v130
  %vm182 = vcmp.eq.s32.totalorder %v176, %v130
  %vm183 = vcmp.eq.s32.totalorder %v179, %v130
  %v184 = vsel %vm180, 1, 0
  %v185 = vsel %vm181, 1, 0
  %v186 = vsel %vm182, 1, 0
  %v187 = vsel %vm183, 1, 0
  %v188 = vcvt.s32.f32 %v184
  %v189 = vcvt.s32.f32 %v185
  %v190 = vcvt.s32.f32 %v186
  %v191 = vcvt.s32.f32 %v187
  %v192 = vpack.c.bf16 %v189, %v188
  %v193 = vpack.c.bf16 %v191, %v190
  %v194 = vld [vmem:[%s5] sm:$0x1]
  %v195 = vperm.slane %v194, 0
  %vm196 = vcmp.eq.s32.totalorder %v195, %v132
  %vm197 = vcmp.eq.s32.totalorder %v195, %v133
  %v198 = vsel %vm196, 1, 0
  %v199 = vsel %vm197, 1, 0
  %v200 = vcvt.s32.f32 %v198
  %v201 = vcvt.s32.f32 %v199
  %v202 = vpack.c.bf16 %v201, %v200
  %v203 = vld [vmem:[%s7] sm:$0xff]
  %v204 = vld [vmem:[%s7 + $0x8] sm:$0xff]
  %v205 = vld [vmem:[%s11] sm:$0xf]
  %v206 = vld [vmem:[%s11 + $0x4] sm:$0xf]
  %v207 = vld [vmem:[%s13] sm:$0xf]
  %v208 = vld [vmem:[%s13 + $0x4] sm:$0xf]
  %v209 = vld [vmem:[%s15] sm:$0x1]
  %v210 = vld [vmem:[%s17] sm:$0xf]
  %v211 = vld [vmem:[%s17 + $0x4] sm:$0xf]
  %v212 = vld [vmem:[%s17 + $0x8] sm:$0xf]
  %v213 = vld [vmem:[%s17 + $0xc] sm:$0xf]
  %v214 = vld [vmem:[%s17 + $0x10] sm:$0xf]
  %v215 = vld [vmem:[%s17 + $0x14] sm:$0xf]
  %v216 = vld [vmem:[%s17 + $0x18] sm:$0xf]
  %v217 = vld [vmem:[%s17 + $0x1c] sm:$0xf]
  %v218 = vld [vmem:[%s19] sm:$0x1]
  %v219 = vld [vmem:[%s21] sm:$0xf]
  %v220 = vld [vmem:[%s21 + $0x4] sm:$0xf]
  %v221 = vld [vmem:[%s21 + $0x8] sm:$0xf]
  %v222 = vld [vmem:[%s21 + $0xc] sm:$0xf]
  %v223 = vld [vmem:[%s21 + $0x10] sm:$0xf]
  %v224 = vld [vmem:[%s21 + $0x14] sm:$0xf]
  %v225 = vld [vmem:[%s21 + $0x18] sm:$0xf]
  %v226 = vld [vmem:[%s21 + $0x1c] sm:$0xf]
  %v227 = vld [vmem:[%s23] sm:$0x1]
  %v228 = vpack.c.bf16 %v204, %v203
  %v230 = vperm.slane %v209, 0
  %v234 = vunpack.c.l.b16 %v205
  %v235 = vunpack.c.l.b16 %v206
  %v236 = vpack.c.b16 %v235, %v234
  %vm238 = vcmask 130048
  %v240 = vsel %vm238, %v228, 0
  %242 = vmatpush.bf16.msra.mxu0 0
  %243 = vmatpush.bf16.msra.mxu0 0
  %244 = vmatpush.bf16.msra.mxu0 0
  %245 = vmatpush.bf16.msra.mxu0 0
  %246 = vmatpush.bf16.msra.mxu0 0
  %247 = vmatpush.bf16.msra.mxu0 0
  %248 = vmatpush.bf16.msra.mxu0 0
  %249 = vmatpush.bf16.msra.mxu0 %v236
  %250 = vmatmul.bf16.gmra.mxu0 %v240
  %v251 = vpop.f32.mrf.mxu0
  %v252 = vadd.f32 %v230, %v251
  %v253 = vpop.f32.mrf.mxu0
  %v254 = vadd.f32 %v230, %v253
  %255 = vdwg.mxu0
  %v258 = vunpack.c.l.b16 %v207
  %v259 = vunpack.c.l.b16 %v208
  %v260 = vpack.c.b16 %v259, %v258
  %262 = vmatpush.bf16.msra.mxu0 0
  %263 = vmatpush.bf16.msra.mxu0 0
  %264 = vmatpush.bf16.msra.mxu0 0
  %265 = vmatpush.bf16.msra.mxu0 0
  %266 = vmatpush.bf16.msra.mxu0 0
  %267 = vmatpush.bf16.msra.mxu0 0
  %268 = vmatpush.bf16.msra.mxu0 0
  %269 = vmatpush.bf16.msra.mxu0 %v260
  %270 = vmatmul.bf16.gmra.mxu0 %v240
  %v271 = vpop.f32.mrf.mxu0
  %v272 = vadd.f32 0.0, %v271
  %v273 = vpop.f32.mrf.mxu0
  %v274 = vadd.f32 0.0, %v273
  %275 = vdwg.mxu0
  %v276 = vpack.c.bf16 %v254, %v252
  %v277 = vpack.c.bf16 %v274, %v272
  %v279 = vsel %vm238, %v162, 0
  %v282 = vsel %vm238, %v163, 0
  %284 = vmatpush.bf16.msra.mxu0 0
  %285 = vmatpush.bf16.msra.mxu0 0
  %286 = vmatpush.bf16.msra.mxu0 0
  %287 = vmatpush.bf16.msra.mxu0 0
  %288 = vmatpush.bf16.msra.mxu0 0
  %289 = vmatpush.bf16.msra.mxu0 0
  %290 = vmatpush.bf16.msra.mxu0 0
  %291 = vmatpush.bf16.msra.mxu0 %v277
  %292 = vmatmul.bf16.gmra.mxu0 %v279
  %v293 = vpop.f32.mrf.mxu0
  %v294 = vadd.f32 0.0, %v293
  %v295 = vpop.f32.mrf.mxu0
  %v296 = vadd.f32 0.0, %v295
  %297 = vmatmul.bf16.gmra.mxu0 %v282
  %v298 = vpop.f32.mrf.mxu0
  %v299 = vadd.f32 0.0, %v298
  %v300 = vpop.f32.mrf.mxu0
  %v301 = vadd.f32 0.0, %v300
  %302 = vdwg.mxu0
  %v304 = vsel %vm238, %v192, 0
  %v307 = vsel %vm238, %v193, 0
  %309 = vmatpush.bf16.msra.mxu0 0
  %310 = vmatpush.bf16.msra.mxu0 0
  %311 = vmatpush.bf16.msra.mxu0 0
  %312 = vmatpush.bf16.msra.mxu0 0
  %313 = vmatpush.bf16.msra.mxu0 0
  %314 = vmatpush.bf16.msra.mxu0 0
  %315 = vmatpush.bf16.msra.mxu0 0
  %316 = vmatpush.bf16.msra.mxu0 %v276
  %317 = vmatmul.bf16.gmra.mxu0 %v304
  %v318 = vpop.f32.mrf.mxu0
  %v319 = vadd.f32 %v294, %v318
  %v320 = vpop.f32.mrf.mxu0
  %v321 = vadd.f32 %v296, %v320
  %322 = vmatmul.bf16.gmra.mxu0 %v307
  %v323 = vpop.f32.mrf.mxu0
  %v324 = vadd.f32 %v299, %v323
  %v325 = vpop.f32.mrf.mxu0
  %v326 = vadd.f32 %v301, %v325
  %327 = vdwg.mxu0
  %v328 = vmax.f32 %v319, 0.0
  %v329 = vmax.f32 %v321, 0.0
  %v330 = vmax.f32 %v324, 0.0
  %v331 = vmax.f32 %v326, 0.0
  %v332 = vpack.c.bf16 %v329, %v328
  %v333 = vpack.c.bf16 %v331, %v330
  %v335 = vperm.slane %v218, 0
  %v345 = vunpack.c.l.b16 %v210
  %v346 = vunpack.c.l.b16 %v211
  %v347 = vunpack.c.l.b16 %v212
  %v348 = vunpack.c.l.b16 %v213
  %v349 = vunpack.c.l.b16 %v214
  %v350 = vunpack.c.l.b16 %v215
  %v351 = vunpack.c.l.b16 %v216
  %v352 = vunpack.c.l.b16 %v217
  %v353 = vpack.c.b16 %v346, %v345
  %v354 = vpack.c.b16 %v348, %v347
  %v355 = vpack.c.b16 %v350, %v349
  %v356 = vpack.c.b16 %v352, %v351
  %vm361 = vcmask 523264
  %v363 = vsel %vm361, %v332, 0
  %v366 = vsel %vm361, %v333, 0
  %368 = vmatpush.bf16.msra.mxu0 0
  %369 = vmatpush.bf16.msra.mxu0 0
  %370 = vmatpush.bf16.msra.mxu0 0
  %371 = vmatpush.bf16.msra.mxu0 0
  %372 = vmatpush.bf16.msra.mxu0 %v356
  %373 = vmatpush.bf16.msra.mxu0 %v355
  %374 = vmatpush.bf16.msra.mxu0 %v354
  %375 = vmatpush.bf16.msra.mxu0 %v353
  %376 = vmatmul.bf16.gmra.mxu0 %v363
  %v377 = vpop.f32.mrf.mxu0
  %v378 = vadd.f32 %v335, %v377
  %v379 = vpop.f32.mrf.mxu0
  %v380 = vadd.f32 %v335, %v379
  %381 = vmatmul.bf16.gmra.mxu0 %v366
  %v382 = vpop.f32.mrf.mxu0
  %v383 = vadd.f32 %v335, %v382
  %v384 = vpop.f32.mrf.mxu0
  %v385 = vadd.f32 %v335, %v384
  %386 = vdwg.mxu0
  %v387 = vmax.f32 %v378, 0.0
  %v388 = vmax.f32 %v380, 0.0
  %v389 = vmax.f32 %v383, 0.0
  %v390 = vmax.f32 %v385, 0.0
  %v391 = vpack.c.bf16 %v388, %v387
  %v392 = vpack.c.bf16 %v390, %v389
  %v394 = vperm.slane %v227, 0
  %v404 = vunpack.c.l.b16 %v219
  %v405 = vunpack.c.l.b16 %v220
  %v406 = vunpack.c.l.b16 %v221
  %v407 = vunpack.c.l.b16 %v222
  %v408 = vunpack.c.l.b16 %v223
  %v409 = vunpack.c.l.b16 %v224
  %v410 = vunpack.c.l.b16 %v225
  %v411 = vunpack.c.l.b16 %v226
  %v412 = vpack.c.b16 %v405, %v404
  %v413 = vpack.c.b16 %v407, %v406
  %v414 = vpack.c.b16 %v409, %v408
  %v415 = vpack.c.b16 %v411, %v410
  %v421 = vsel %vm361, %v391, 0
  %v424 = vsel %vm361, %v392, 0
  %426 = vmatpush.bf16.msra.mxu0 0
  %427 = vmatpush.bf16.msra.mxu0 0
  %428 = vmatpush.bf16.msra.mxu0 0
  %429 = vmatpush.bf16.msra.mxu0 0
  %430 = vmatpush.bf16.msra.mxu0 %v415
  %431 = vmatpush.bf16.msra.mxu0 %v414
  %432 = vmatpush.bf16.msra.mxu0 %v413
  %433 = vmatpush.bf16.msra.mxu0 %v412
  %434 = vmatmul.bf16.gmra.mxu0 %v421
  %v435 = vpop.f32.mrf.mxu0
  %v436 = vadd.f32 %v394, %v435
  %v437 = vpop.f32.mrf.mxu0
  %v438 = vadd.f32 %v394, %v437
  %439 = vmatmul.bf16.gmra.mxu0 %v424
  %v440 = vpop.f32.mrf.mxu0
  %v441 = vadd.f32 %v394, %v440
  %v442 = vpop.f32.mrf.mxu0
  %v443 = vadd.f32 %v394, %v442
  %444 = vdwg.mxu0
  %v445 = vpack.c.bf16 %v438, %v436
  %v446 = vpack.c.bf16 %v443, %v441
  %vm447 = vcmask 261120
  %v449 = vsel %vm447, %v202, 0
  %451 = vmatpush.bf16.msra.mxu0 0
  %452 = vmatpush.bf16.msra.mxu0 0
  %453 = vmatpush.bf16.msra.mxu0 0
  %454 = vmatpush.bf16.msra.mxu0 0
  %455 = vmatpush.bf16.msra.mxu0 0
  %456 = vmatpush.bf16.msra.mxu0 0
  %457 = vmatpush.bf16.msra.mxu0 %v446
  %458 = vmatpush.bf16.msra.mxu0 %v445
  %459 = vmatmul.bf16.gmra.mxu0 %v449
  %v460 = vpop.f32.mrf.mxu0
  %v461 = vadd.f32 0.0, %v460
  %v462 = vpop.f32.mrf.mxu0
  %v463 = vadd.f32 0.0, %v462
  %464 = vdwg.mxu0
  %v465 = vld [vmem:[%s25] sm:$0xf]
  %v466 = vld [vmem:[%s25 + $0x4] sm:$0xf]
  %v467 = vld [vmem:[%s25 + $0x8] sm:$0xf]
  %v468 = vld [vmem:[%s25 + $0xc] sm:$0xf]
  %v469 = vld [vmem:[%s25 + $0x10] sm:$0xf]
  %v470 = vld [vmem:[%s25 + $0x14] sm:$0xf]
  %v471 = vld [vmem:[%s25 + $0x18] sm:$0xf]
  %v472 = vld [vmem:[%s25 + $0x1c] sm:$0xf]
  %v473 = vld [vmem:[%s27] sm:$0xf]
  %v474 = vld [vmem:[%s27 + $0x4] sm:$0xf]
  %v475 = vld [vmem:[%s27 + $0x8] sm:$0xf]
  %v476 = vld [vmem:[%s27 + $0xc] sm:$0xf]
  %v477 = vld [vmem:[%s27 + $0x10] sm:$0xf]
  %v478 = vld [vmem:[%s27 + $0x14] sm:$0xf]
  %v479 = vld [vmem:[%s27 + $0x18] sm:$0xf]
  %v480 = vld [vmem:[%s27 + $0x1c] sm:$0xf]
  %v481 = vld [vmem:[%s29] sm:$0x1]
  %v482 = vld [vmem:[%s31] sm:$0xf]
  %v483 = vld [vmem:[%s31 + $0x4] sm:$0xf]
  %v484 = vld [vmem:[%s31 + $0x8] sm:$0xf]
  %v485 = vld [vmem:[%s31 + $0xc] sm:$0xf]
  %v486 = vld [vmem:[%s31 + $0x10] sm:$0xf]
  %v487 = vld [vmem:[%s31 + $0x14] sm:$0xf]
  %v488 = vld [vmem:[%s31 + $0x18] sm:$0xf]
  %v489 = vld [vmem:[%s31 + $0x1c] sm:$0xf]
  %v490 = vld [vmem:[%s31 + $0x20] sm:$0xf]
  %v491 = vld [vmem:[%s31 + $0x24] sm:$0xf]
  %v492 = vld [vmem:[%s31 + $0x28] sm:$0xf]
  %v493 = vld [vmem:[%s31 + $0x2c] sm:$0xf]
  %v494 = vld [vmem:[%s31 + $0x30] sm:$0xf]
  %v495 = vld [vmem:[%s31 + $0x34] sm:$0xf]
  %v496 = vld [vmem:[%s31 + $0x38] sm:$0xf]
  %v497 = vld [vmem:[%s31 + $0x3c] sm:$0xf]
  %v498 = vld [vmem:[%s33] sm:$0x1]
  %v499 = vld [vmem:[%s35] sm:$0xf]
  %v500 = vld [vmem:[%s35 + $0x4] sm:$0xf]
  %v501 = vld [vmem:[%s35 + $0x8] sm:$0xf]
  %v502 = vld [vmem:[%s35 + $0xc] sm:$0xf]
  %v503 = vld [vmem:[%s35 + $0x10] sm:$0xf]
  %v504 = vld [vmem:[%s35 + $0x14] sm:$0xf]
  %v505 = vld [vmem:[%s35 + $0x18] sm:$0xf]
  %v506 = vld [vmem:[%s35 + $0x1c] sm:$0xf]
  %v507 = vld [vmem:[%s35 + $0x20] sm:$0xf]
  %v508 = vld [vmem:[%s35 + $0x24] sm:$0xf]
  %v509 = vld [vmem:[%s35 + $0x28] sm:$0xf]
  %v510 = vld [vmem:[%s35 + $0x2c] sm:$0xf]
  %v511 = vld [vmem:[%s35 + $0x30] sm:$0xf]
  %v512 = vld [vmem:[%s35 + $0x34] sm:$0xf]
  %v513 = vld [vmem:[%s35 + $0x38] sm:$0xf]
  %v514 = vld [vmem:[%s35 + $0x3c] sm:$0xf]
  %v515 = vld [vmem:[%s37] sm:$0x1]
  %v516 = vpack.c.bf16 %v463, %v461
  %v518 = vperm.slane %v481, 0
  %v528 = vunpack.c.l.b16 %v465
  %v529 = vunpack.c.l.b16 %v466
  %v530 = vunpack.c.l.b16 %v467
  %v531 = vunpack.c.l.b16 %v468
  %v532 = vunpack.c.l.b16 %v469
  %v533 = vunpack.c.l.b16 %v470
  %v534 = vunpack.c.l.b16 %v471
  %v535 = vunpack.c.l.b16 %v472
  %v536 = vpack.c.b16 %v529, %v528
  %v537 = vpack.c.b16 %v531, %v530
  %v538 = vpack.c.b16 %v533, %v532
  %v539 = vpack.c.b16 %v535, %v534
  %v545 = vsel %vm361, %v516, 0
  %547 = vmatpush.bf16.msra.mxu0 0
  %548 = vmatpush.bf16.msra.mxu0 0
  %549 = vmatpush.bf16.msra.mxu0 0
  %550 = vmatpush.bf16.msra.mxu0 0
  %551 = vmatpush.bf16.msra.mxu0 %v539
  %552 = vmatpush.bf16.msra.mxu0 %v538
  %553 = vmatpush.bf16.msra.mxu0 %v537
  %554 = vmatpush.bf16.msra.mxu0 %v536
  %555 = vmatmul.bf16.gmra.mxu0 %v545
  %v556 = vpop.f32.mrf.mxu0
  %v557 = vadd.f32 %v518, %v556
  %v558 = vpop.f32.mrf.mxu0
  %v559 = vadd.f32 %v518, %v558
  %560 = vdwg.mxu0
  %v569 = vunpack.c.l.b16 %v473
  %v570 = vunpack.c.l.b16 %v474
  %v571 = vunpack.c.l.b16 %v475
  %v572 = vunpack.c.l.b16 %v476
  %v573 = vunpack.c.l.b16 %v477
  %v574 = vunpack.c.l.b16 %v478
  %v575 = vunpack.c.l.b16 %v479
  %v576 = vunpack.c.l.b16 %v480
  %v577 = vpack.c.b16 %v570, %v569
  %v578 = vpack.c.b16 %v572, %v571
  %v579 = vpack.c.b16 %v574, %v573
  %v580 = vpack.c.b16 %v576, %v575
  %585 = vmatpush.bf16.msra.mxu0 0
  %586 = vmatpush.bf16.msra.mxu0 0
  %587 = vmatpush.bf16.msra.mxu0 0
  %588 = vmatpush.bf16.msra.mxu0 0
  %589 = vmatpush.bf16.msra.mxu0 %v580
  %590 = vmatpush.bf16.msra.mxu0 %v579
  %591 = vmatpush.bf16.msra.mxu0 %v578
  %592 = vmatpush.bf16.msra.mxu0 %v577
  %593 = vmatmul.bf16.gmra.mxu0 %v545
  %v594 = vpop.f32.mrf.mxu0
  %v595 = vadd.f32 0.0, %v594
  %v596 = vpop.f32.mrf.mxu0
  %v597 = vadd.f32 0.0, %v596
  %598 = vdwg.mxu0
  %v599 = vpack.c.bf16 %v559, %v557
  %v600 = vpack.c.bf16 %v597, %v595
  %601 = vmatpush.bf16.msra.mxu0 0
  %602 = vmatpush.bf16.msra.mxu0 0
  %603 = vmatpush.bf16.msra.mxu0 0
  %604 = vmatpush.bf16.msra.mxu0 0
  %605 = vmatpush.bf16.msra.mxu0 0
  %606 = vmatpush.bf16.msra.mxu0 0
  %607 = vmatpush.bf16.msra.mxu0 0
  %608 = vmatpush.bf16.msra.mxu0 %v600
  %609 = vmatmul.bf16.gmra.mxu0 %v279
  %v610 = vpop.f32.mrf.mxu0
  %v611 = vadd.f32 0.0, %v610
  %v612 = vpop.f32.mrf.mxu0
  %v613 = vadd.f32 0.0, %v612
  %614 = vmatmul.bf16.gmra.mxu0 %v282
  %v615 = vpop.f32.mrf.mxu0
  %v616 = vadd.f32 0.0, %v615
  %v617 = vpop.f32.mrf.mxu0
  %v618 = vadd.f32 0.0, %v617
  %619 = vdwg.mxu0
  %620 = vmatpush.bf16.msra.mxu0 0
  %621 = vmatpush.bf16.msra.mxu0 0
  %622 = vmatpush.bf16.msra.mxu0 0
  %623 = vmatpush.bf16.msra.mxu0 0
  %624 = vmatpush.bf16.msra.mxu0 0
  %625 = vmatpush.bf16.msra.mxu0 0
  %626 = vmatpush.bf16.msra.mxu0 0
  %627 = vmatpush.bf16.msra.mxu0 %v599
  %628 = vmatmul.bf16.gmra.mxu0 %v304
  %v629 = vpop.f32.mrf.mxu0
  %v630 = vadd.f32 %v611, %v629
  %v631 = vpop.f32.mrf.mxu0
  %v632 = vadd.f32 %v613, %v631
  %633 = vmatmul.bf16.gmra.mxu0 %v307
  %v634 = vpop.f32.mrf.mxu0
  %v635 = vadd.f32 %v616, %v634
  %v636 = vpop.f32.mrf.mxu0
  %v637 = vadd.f32 %v618, %v636
  %638 = vdwg.mxu0
  %v639 = vmax.f32 %v630, 0.0
  %v640 = vmax.f32 %v632, 0.0
  %v641 = vmax.f32 %v635, 0.0
  %v642 = vmax.f32 %v637, 0.0
  %v643 = vpack.c.bf16 %v640, %v639
  %v644 = vpack.c.bf16 %v642, %v641
  %v646 = vperm.slane %v498, 0
  %v664 = vunpack.c.l.b16 %v482
  %v665 = vunpack.c.l.b16 %v483
  %v666 = vunpack.c.l.b16 %v484
  %v667 = vunpack.c.l.b16 %v485
  %v668 = vunpack.c.l.b16 %v486
  %v669 = vunpack.c.l.b16 %v487
  %v670 = vunpack.c.l.b16 %v488
  %v671 = vunpack.c.l.b16 %v489
  %v672 = vunpack.c.l.b16 %v490
  %v673 = vunpack.c.l.b16 %v491
  %v674 = vunpack.c.l.b16 %v492
  %v675 = vunpack.c.l.b16 %v493
  %v676 = vunpack.c.l.b16 %v494
  %v677 = vunpack.c.l.b16 %v495
  %v678 = vunpack.c.l.b16 %v496
  %v679 = vunpack.c.l.b16 %v497
  %v680 = vpack.c.b16 %v665, %v664
  %v681 = vpack.c.b16 %v667, %v666
  %v682 = vpack.c.b16 %v669, %v668
  %v683 = vpack.c.b16 %v671, %v670
  %v684 = vpack.c.b16 %v673, %v672
  %v685 = vpack.c.b16 %v675, %v674
  %v686 = vpack.c.b16 %v677, %v676
  %v687 = vpack.c.b16 %v679, %v678
  %696 = vmatpush.bf16.msra.mxu0 %v687
  %697 = vmatpush.bf16.msra.mxu0 %v686
  %698 = vmatpush.bf16.msra.mxu0 %v685
  %699 = vmatpush.bf16.msra.mxu0 %v684
  %700 = vmatpush.bf16.msra.mxu0 %v683
  %701 = vmatpush.bf16.msra.mxu0 %v682
  %702 = vmatpush.bf16.msra.mxu0 %v681
  %703 = vmatpush.bf16.msra.mxu0 %v680
  %704 = vmatmul.bf16.gmra.mxu0 %v643
  %v705 = vpop.f32.mrf.mxu0
  %v706 = vadd.f32 %v646, %v705
  %v707 = vpop.f32.mrf.mxu0
  %v708 = vadd.f32 %v646, %v707
  %709 = vmatmul.bf16.gmra.mxu0 %v644
  %v710 = vpop.f32.mrf.mxu0
  %v711 = vadd.f32 %v646, %v710
  %v712 = vpop.f32.mrf.mxu0
  %v713 = vadd.f32 %v646, %v712
  %714 = vdwg.mxu0
  %v715 = vmax.f32 %v706, 0.0
  %v716 = vmax.f32 %v708, 0.0
  %v717 = vmax.f32 %v711, 0.0
  %v718 = vmax.f32 %v713, 0.0
  %v719 = vpack.c.bf16 %v716, %v715
  %v720 = vpack.c.bf16 %v718, %v717
  %v722 = vperm.slane %v515, 0
  %v740 = vunpack.c.l.b16 %v499
  %v741 = vunpack.c.l.b16 %v500
  %v742 = vunpack.c.l.b16 %v501
  %v743 = vunpack.c.l.b16 %v502
  %v744 = vunpack.c.l.b16 %v503
  %v745 = vunpack.c.l.b16 %v504
  %v746 = vunpack.c.l.b16 %v505
  %v747 = vunpack.c.l.b16 %v506
  %v748 = vunpack.c.l.b16 %v507
  %v749 = vunpack.c.l.b16 %v508
  %v750 = vunpack.c.l.b16 %v509
  %v751 = vunpack.c.l.b16 %v510
  %v752 = vunpack.c.l.b16 %v511
  %v753 = vunpack.c.l.b16 %v512
  %v754 = vunpack.c.l.b16 %v513
  %v755 = vunpack.c.l.b16 %v514
  %v756 = vpack.c.b16 %v741, %v740
  %v757 = vpack.c.b16 %v743, %v742
  %v758 = vpack.c.b16 %v745, %v744
  %v759 = vpack.c.b16 %v747, %v746
  %v760 = vpack.c.b16 %v749, %v748
  %v761 = vpack.c.b16 %v751, %v750
  %v762 = vpack.c.b16 %v753, %v752
  %v763 = vpack.c.b16 %v755, %v754
  %772 = vmatpush.bf16.msra.mxu0 %v763
  %773 = vmatpush.bf16.msra.mxu0 %v762
  %774 = vmatpush.bf16.msra.mxu0 %v761
  %775 = vmatpush.bf16.msra.mxu0 %v760
  %776 = vmatpush.bf16.msra.mxu0 %v759
  %777 = vmatpush.bf16.msra.mxu0 %v758
  %778 = vmatpush.bf16.msra.mxu0 %v757
  %779 = vmatpush.bf16.msra.mxu0 %v756
  %780 = vmatmul.bf16.gmra.mxu0 %v719
  %v781 = vpop.f32.mrf.mxu0
  %v782 = vadd.f32 %v722, %v781
  %v783 = vpop.f32.mrf.mxu0
  %v784 = vadd.f32 %v722, %v783
  %785 = vmatmul.bf16.gmra.mxu0 %v720
  %v786 = vpop.f32.mrf.mxu0
  %v787 = vadd.f32 %v722, %v786
  %v788 = vpop.f32.mrf.mxu0
  %v789 = vadd.f32 %v722, %v788
  %790 = vdwg.mxu0
  %v791 = vpack.c.bf16 %v784, %v782
  %v792 = vpack.c.bf16 %v789, %v787
  %793 = vmatpush.bf16.msra.mxu0 0
  %794 = vmatpush.bf16.msra.mxu0 0
  %795 = vmatpush.bf16.msra.mxu0 0
  %796 = vmatpush.bf16.msra.mxu0 0
  %797 = vmatpush.bf16.msra.mxu0 0
  %798 = vmatpush.bf16.msra.mxu0 0
  %799 = vmatpush.bf16.msra.mxu0 %v792
  %800 = vmatpush.bf16.msra.mxu0 %v791
  %801 = vmatmul.bf16.gmra.mxu0 %v449
  %v802 = vpop.f32.mrf.mxu0
  %v803 = vadd.f32 0.0, %v802
  %v804 = vpop.f32.mrf.mxu0
  %v805 = vadd.f32 0.0, %v804
  %806 = vdwg.mxu0
  %v807 = vld [vmem:[%s39] sm:$0xff]
  %v808 = vld [vmem:[%s39 + $0x8] sm:$0xff]
  %v809 = vld [vmem:[%s39 + $0x10] sm:$0xff]
  %v810 = vld [vmem:[%s39 + $0x18] sm:$0xff]
  %v811 = vld [vmem:[%s39 + $0x20] sm:$0xff]
  %v812 = vld [vmem:[%s39 + $0x28] sm:$0xff]
  %v813 = vld [vmem:[%s39 + $0x30] sm:$0xff]
  %v814 = vld [vmem:[%s39 + $0x38] sm:$0xff]
  %v815 = vld [vmem:[%s39 + $0x40] sm:$0xff]
  %v816 = vld [vmem:[%s39 + $0x48] sm:$0xff]
  %v817 = vld [vmem:[%s39 + $0x50] sm:$0xff]
  %v818 = vld [vmem:[%s39 + $0x58] sm:$0xff]
  %v819 = vld [vmem:[%s39 + $0x60] sm:$0xff]
  %v820 = vld [vmem:[%s39 + $0x68] sm:$0xff]
  %v821 = vld [vmem:[%s39 + $0x70] sm:$0xff]
  %v822 = vld [vmem:[%s39 + $0x78] sm:$0xff]
  %v823 = vld [vmem:[%s41] sm:$0xff]
  %v824 = vld [vmem:[%s41 + $0x8] sm:$0xff]
  %v825 = vld [vmem:[%s41 + $0x10] sm:$0xff]
  %v826 = vld [vmem:[%s41 + $0x18] sm:$0xff]
  %v827 = vld [vmem:[%s41 + $0x20] sm:$0xff]
  %v828 = vld [vmem:[%s41 + $0x28] sm:$0xff]
  %v829 = vld [vmem:[%s41 + $0x30] sm:$0xff]
  %v830 = vld [vmem:[%s41 + $0x38] sm:$0xff]
  %v831 = vld [vmem:[%s41 + $0x40] sm:$0xff]
  %v832 = vld [vmem:[%s41 + $0x48] sm:$0xff]
  %v833 = vld [vmem:[%s41 + $0x50] sm:$0xff]
  %v834 = vld [vmem:[%s41 + $0x58] sm:$0xff]
  %v835 = vld [vmem:[%s41 + $0x60] sm:$0xff]
  %v836 = vld [vmem:[%s41 + $0x68] sm:$0xff]
  %v837 = vld [vmem:[%s41 + $0x70] sm:$0xff]
  %v838 = vld [vmem:[%s41 + $0x78] sm:$0xff]
  %v839 = vld [vmem:[%s43] sm:$0x3]
  %v840 = vld [vmem:[%s45] sm:$0xff]
  %v841 = vld [vmem:[%s45 + $0x8] sm:$0xff]
  %v842 = vld [vmem:[%s45 + $0x10] sm:$0xff]
  %v843 = vld [vmem:[%s45 + $0x18] sm:$0xff]
  %v844 = vld [vmem:[%s45 + $0x20] sm:$0xff]
  %v845 = vld [vmem:[%s45 + $0x28] sm:$0xff]
  %v846 = vld [vmem:[%s45 + $0x30] sm:$0xff]
  %v847 = vld [vmem:[%s45 + $0x38] sm:$0xff]
  %v848 = vld [vmem:[%s45 + $0x40] sm:$0xff]
  %v849 = vld [vmem:[%s45 + $0x48] sm:$0xff]
  %v850 = vld [vmem:[%s45 + $0x50] sm:$0xff]
  %v851 = vld [vmem:[%s45 + $0x58] sm:$0xff]
  %v852 = vld [vmem:[%s45 + $0x60] sm:$0xff]
  %v853 = vld [vmem:[%s45 + $0x68] sm:$0xff]
  %v854 = vld [vmem:[%s45 + $0x70] sm:$0xff]
  %v855 = vld [vmem:[%s45 + $0x78] sm:$0xff]
  %v856 = vld [vmem:[%s45 + $0x80] sm:$0xff]
  %v857 = vld [vmem:[%s45 + $0x88] sm:$0xff]
  %v858 = vld [vmem:[%s45 + $0x90] sm:$0xff]
  %v859 = vld [vmem:[%s45 + $0x98] sm:$0xff]
  %v860 = vld [vmem:[%s45 + $0xa0] sm:$0xff]
  %v861 = vld [vmem:[%s45 + $0xa8] sm:$0xff]
  %v862 = vld [vmem:[%s45 + $0xb0] sm:$0xff]
  %v863 = vld [vmem:[%s45 + $0xb8] sm:$0xff]
  %v864 = vld [vmem:[%s45 + $0xc0] sm:$0xff]
  %v865 = vld [vmem:[%s45 + $0xc8] sm:$0xff]
  %v866 = vld [vmem:[%s45 + $0xd0] sm:$0xff]
  %v867 = vld [vmem:[%s45 + $0xd8] sm:$0xff]
  %v868 = vld [vmem:[%s45 + $0xe0] sm:$0xff]
  %v869 = vld [vmem:[%s45 + $0xe8] sm:$0xff]
  %v870 = vld [vmem:[%s45 + $0xf0] sm:$0xff]
  %v871 = vld [vmem:[%s45 + $0xf8] sm:$0xff]
  %v872 = vld [vmem:[%s47] sm:$0x3]
  %v873 = vld [vmem:[%s49] sm:$0xff]
  %v874 = vld [vmem:[%s49 + $0x8] sm:$0xff]
  %v875 = vld [vmem:[%s49 + $0x10] sm:$0xff]
  %v876 = vld [vmem:[%s49 + $0x18] sm:$0xff]
  %v877 = vld [vmem:[%s49 + $0x20] sm:$0xff]
  %v878 = vld [vmem:[%s49 + $0x28] sm:$0xff]
  %v879 = vld [vmem:[%s49 + $0x30] sm:$0xff]
  %v880 = vld [vmem:[%s49 + $0x38] sm:$0xff]
  %v881 = vld [vmem:[%s49 + $0x40] sm:$0xff]
  %v882 = vld [vmem:[%s49 + $0x48] sm:$0xff]
  %v883 = vld [vmem:[%s49 + $0x50] sm:$0xff]
  %v884 = vld [vmem:[%s49 + $0x58] sm:$0xff]
  %v885 = vld [vmem:[%s49 + $0x60] sm:$0xff]
  %v886 = vld [vmem:[%s49 + $0x68] sm:$0xff]
  %v887 = vld [vmem:[%s49 + $0x70] sm:$0xff]
  %v888 = vld [vmem:[%s49 + $0x78] sm:$0xff]
  %v889 = vld [vmem:[%s49 + $0x80] sm:$0xff]
  %v890 = vld [vmem:[%s49 + $0x88] sm:$0xff]
  %v891 = vld [vmem:[%s49 + $0x90] sm:$0xff]
  %v892 = vld [vmem:[%s49 + $0x98] sm:$0xff]
  %v893 = vld [vmem:[%s49 + $0xa0] sm:$0xff]
  %v894 = vld [vmem:[%s49 + $0xa8] sm:$0xff]
  %v895 = vld [vmem:[%s49 + $0xb0] sm:$0xff]
  %v896 = vld [vmem:[%s49 + $0xb8] sm:$0xff]
  %v897 = vld [vmem:[%s49 + $0xc0] sm:$0xff]
  %v898 = vld [vmem:[%s49 + $0xc8] sm:$0xff]
  %v899 = vld [vmem:[%s49 + $0xd0] sm:$0xff]
  %v900 = vld [vmem:[%s49 + $0xd8] sm:$0xff]
  %v901 = vld [vmem:[%s49 + $0xe0] sm:$0xff]
  %v902 = vld [vmem:[%s49 + $0xe8] sm:$0xff]
  %v903 = vld [vmem:[%s49 + $0xf0] sm:$0xff]
  %v904 = vld [vmem:[%s49 + $0xf8] sm:$0xff]
  %v905 = vld [vmem:[%s51] sm:$0x3]
  %v906 = vpack.c.bf16 %v805, %v803
  %v908 = vperm.slane %v839, 0
  %v909 = vperm.slane %v839, 1
  %v928 = vunpack.c.l.b16 %v807
  %v929 = vunpack.c.h.b16 %v807
  %v930 = vunpack.c.l.b16 %v808
  %v931 = vunpack.c.h.b16 %v808
  %v932 = vunpack.c.l.b16 %v809
  %v933 = vunpack.c.h.b16 %v809
  %v934 = vunpack.c.l.b16 %v810
  %v935 = vunpack.c.h.b16 %v810
  %v936 = vunpack.c.l.b16 %v811
  %v937 = vunpack.c.h.b16 %v811
  %v938 = vunpack.c.l.b16 %v812
  %v939 = vunpack.c.h.b16 %v812
  %v940 = vunpack.c.l.b16 %v813
  %v941 = vunpack.c.h.b16 %v813
  %v942 = vunpack.c.l.b16 %v814
  %v943 = vunpack.c.h.b16 %v814
  %v944 = vunpack.c.l.b16 %v815
  %v945 = vunpack.c.h.b16 %v815
  %v946 = vunpack.c.l.b16 %v816
  %v947 = vunpack.c.h.b16 %v816
  %v948 = vunpack.c.l.b16 %v817
  %v949 = vunpack.c.h.b16 %v817
  %v950 = vunpack.c.l.b16 %v818
  %v951 = vunpack.c.h.b16 %v818
  %v952 = vunpack.c.l.b16 %v819
  %v953 = vunpack.c.h.b16 %v819
  %v954 = vunpack.c.l.b16 %v820
  %v955 = vunpack.c.h.b16 %v820
  %v956 = vunpack.c.l.b16 %v821
  %v957 = vunpack.c.h.b16 %v821
  %v958 = vunpack.c.l.b16 %v822
  %v959 = vunpack.c.h.b16 %v822
  %v960 = vpack.c.b16 %v930, %v928
  %v961 = vpack.c.b16 %v931, %v929
  %v962 = vpack.c.b16 %v934, %v932
  %v963 = vpack.c.b16 %v935, %v933
  %v964 = vpack.c.b16 %v938, %v936
  %v965 = vpack.c.b16 %v939, %v937
  %v966 = vpack.c.b16 %v942, %v940
  %v967 = vpack.c.b16 %v943, %v941
  %v968 = vpack.c.b16 %v946, %v944
  %v969 = vpack.c.b16 %v947, %v945
  %v970 = vpack.c.b16 %v950, %v948
  %v971 = vpack.c.b16 %v951, %v949
  %v972 = vpack.c.b16 %v954, %v952
  %v973 = vpack.c.b16 %v955, %v953
  %v974 = vpack.c.b16 %v958, %v956
  %v975 = vpack.c.b16 %v959, %v957
  %992 = vmatpush.bf16.msra.mxu0 %v974
  %993 = vmatpush.bf16.msra.mxu0 %v972
  %994 = vmatpush.bf16.msra.mxu0 %v970
  %995 = vmatpush.bf16.msra.mxu0 %v968
  %996 = vmatpush.bf16.msra.mxu0 %v966
  %997 = vmatpush.bf16.msra.mxu0 %v964
  %998 = vmatpush.bf16.msra.mxu0 %v962
  %999 = vmatpush.bf16.msra.mxu0 %v960
  %1000 = vmatmul.bf16.gmra.mxu0 %v906
  %v1001 = vpop.f32.mrf.mxu0
  %v1002 = vadd.f32 %v908, %v1001
  %v1003 = vpop.f32.mrf.mxu0
  %v1004 = vadd.f32 %v908, %v1003
  %1005 = vdwg.mxu0
  %1006 = vmatpush.bf16.msra.mxu0 %v975
  %1007 = vmatpush.bf16.msra.mxu0 %v973
  %1008 = vmatpush.bf16.msra.mxu0 %v971
  %1009 = vmatpush.bf16.msra.mxu0 %v969
  %1010 = vmatpush.bf16.msra.mxu0 %v967
  %1011 = vmatpush.bf16.msra.mxu0 %v965
  %1012 = vmatpush.bf16.msra.mxu0 %v963
  %1013 = vmatpush.bf16.msra.mxu0 %v961
  %1014 = vmatmul.bf16.gmra.mxu0 %v906
  %v1015 = vpop.f32.mrf.mxu0
  %v1016 = vadd.f32 %v909, %v1015
  %v1017 = vpop.f32.mrf.mxu0
  %v1018 = vadd.f32 %v909, %v1017
  %1019 = vdwg.mxu0
  %v1036 = vunpack.c.l.b16 %v823
  %v1037 = vunpack.c.h.b16 %v823
  %v1038 = vunpack.c.l.b16 %v824
  %v1039 = vunpack.c.h.b16 %v824
  %v1040 = vunpack.c.l.b16 %v825
  %v1041 = vunpack.c.h.b16 %v825
  %v1042 = vunpack.c.l.b16 %v826
  %v1043 = vunpack.c.h.b16 %v826
  %v1044 = vunpack.c.l.b16 %v827
  %v1045 = vunpack.c.h.b16 %v827
  %v1046 = vunpack.c.l.b16 %v828
  %v1047 = vunpack.c.h.b16 %v828
  %v1048 = vunpack.c.l.b16 %v829
  %v1049 = vunpack.c.h.b16 %v829
  %v1050 = vunpack.c.l.b16 %v830
  %v1051 = vunpack.c.h.b16 %v830
  %v1052 = vunpack.c.l.b16 %v831
  %v1053 = vunpack.c.h.b16 %v831
  %v1054 = vunpack.c.l.b16 %v832
  %v1055 = vunpack.c.h.b16 %v832
  %v1056 = vunpack.c.l.b16 %v833
  %v1057 = vunpack.c.h.b16 %v833
  %v1058 = vunpack.c.l.b16 %v834
  %v1059 = vunpack.c.h.b16 %v834
  %v1060 = vunpack.c.l.b16 %v835
  %v1061 = vunpack.c.h.b16 %v835
  %v1062 = vunpack.c.l.b16 %v836
  %v1063 = vunpack.c.h.b16 %v836
  %v1064 = vunpack.c.l.b16 %v837
  %v1065 = vunpack.c.h.b16 %v837
  %v1066 = vunpack.c.l.b16 %v838
  %v1067 = vunpack.c.h.b16 %v838
  %v1068 = vpack.c.b16 %v1038, %v1036
  %v1069 = vpack.c.b16 %v1039, %v1037
  %v1070 = vpack.c.b16 %v1042, %v1040
  %v1071 = vpack.c.b16 %v1043, %v1041
  %v1072 = vpack.c.b16 %v1046, %v1044
  %v1073 = vpack.c.b16 %v1047, %v1045
  %v1074 = vpack.c.b16 %v1050, %v1048
  %v1075 = vpack.c.b16 %v1051, %v1049
  %v1076 = vpack.c.b16 %v1054, %v1052
  %v1077 = vpack.c.b16 %v1055, %v1053
  %v1078 = vpack.c.b16 %v1058, %v1056
  %v1079 = vpack.c.b16 %v1059, %v1057
  %v1080 = vpack.c.b16 %v1062, %v1060
  %v1081 = vpack.c.b16 %v1063, %v1061
  %v1082 = vpack.c.b16 %v1066, %v1064
  %v1083 = vpack.c.b16 %v1067, %v1065
  %1100 = vmatpush.bf16.msra.mxu0 %v1082
  %1101 = vmatpush.bf16.msra.mxu0 %v1080
  %1102 = vmatpush.bf16.msra.mxu0 %v1078
  %1103 = vmatpush.bf16.msra.mxu0 %v1076
  %1104 = vmatpush.bf16.msra.mxu0 %v1074
  %1105 = vmatpush.bf16.msra.mxu0 %v1072
  %1106 = vmatpush.bf16.msra.mxu0 %v1070
  %1107 = vmatpush.bf16.msra.mxu0 %v1068
  %1108 = vmatmul.bf16.gmra.mxu0 %v906
  %v1109 = vpop.f32.mrf.mxu0
  %v1110 = vadd.f32 0.0, %v1109
  %v1111 = vpop.f32.mrf.mxu0
  %v1112 = vadd.f32 0.0, %v1111
  %1113 = vdwg.mxu0
  %1114 = vmatpush.bf16.msra.mxu0 %v1083
  %1115 = vmatpush.bf16.msra.mxu0 %v1081
  %1116 = vmatpush.bf16.msra.mxu0 %v1079
  %1117 = vmatpush.bf16.msra.mxu0 %v1077
  %1118 = vmatpush.bf16.msra.mxu0 %v1075
  %1119 = vmatpush.bf16.msra.mxu0 %v1073
  %1120 = vmatpush.bf16.msra.mxu0 %v1071
  %1121 = vmatpush.bf16.msra.mxu0 %v1069
  %1122 = vmatmul.bf16.gmra.mxu0 %v906
  %v1123 = vpop.f32.mrf.mxu0
  %v1124 = vadd.f32 0.0, %v1123
  %v1125 = vpop.f32.mrf.mxu0
  %v1126 = vadd.f32 0.0, %v1125
  %1127 = vdwg.mxu0
  %v1128 = vpack.c.bf16 %v1004, %v1002
  %v1129 = vpack.c.bf16 %v1018, %v1016
  %v1130 = vpack.c.bf16 %v1112, %v1110
  %v1131 = vpack.c.bf16 %v1126, %v1124
  %1132 = vmatpush.bf16.msra.mxu0 0
  %1133 = vmatpush.bf16.msra.mxu0 0
  %1134 = vmatpush.bf16.msra.mxu0 0
  %1135 = vmatpush.bf16.msra.mxu0 0
  %1136 = vmatpush.bf16.msra.mxu0 0
  %1137 = vmatpush.bf16.msra.mxu0 0
  %1138 = vmatpush.bf16.msra.mxu0 0
  %1139 = vmatpush.bf16.msra.mxu0 %v1130
  %1140 = vmatmul.bf16.gmra.mxu0 %v279
  %v1141 = vpop.f32.mrf.mxu0
  %v1142 = vadd.f32 0.0, %v1141
  %v1143 = vpop.f32.mrf.mxu0
  %v1144 = vadd.f32 0.0, %v1143
  %1145 = vmatmul.bf16.gmra.mxu0 %v282
  %v1146 = vpop.f32.mrf.mxu0
  %v1147 = vadd.f32 0.0, %v1146
  %v1148 = vpop.f32.mrf.mxu0
  %v1149 = vadd.f32 0.0, %v1148
  %1150 = vdwg.mxu0
  %1151 = vmatpush.bf16.msra.mxu0 0
  %1152 = vmatpush.bf16.msra.mxu0 0
  %1153 = vmatpush.bf16.msra.mxu0 0
  %1154 = vmatpush.bf16.msra.mxu0 0
  %1155 = vmatpush.bf16.msra.mxu0 0
  %1156 = vmatpush.bf16.msra.mxu0 0
  %1157 = vmatpush.bf16.msra.mxu0 0
  %1158 = vmatpush.bf16.msra.mxu0 %v1131
  %1159 = vmatmul.bf16.gmra.mxu0 %v279
  %v1160 = vpop.f32.mrf.mxu0
  %v1161 = vadd.f32 0.0, %v1160
  %v1162 = vpop.f32.mrf.mxu0
  %v1163 = vadd.f32 0.0, %v1162
  %1164 = vmatmul.bf16.gmra.mxu0 %v282
  %v1165 = vpop.f32.mrf.mxu0
  %v1166 = vadd.f32 0.0, %v1165
  %v1167 = vpop.f32.mrf.mxu0
  %v1168 = vadd.f32 0.0, %v1167
  %1169 = vdwg.mxu0
  %1170 = vmatpush.bf16.msra.mxu0 0
  %1171 = vmatpush.bf16.msra.mxu0 0
  %1172 = vmatpush.bf16.msra.mxu0 0
  %1173 = vmatpush.bf16.msra.mxu0 0
  %1174 = vmatpush.bf16.msra.mxu0 0
  %1175 = vmatpush.bf16.msra.mxu0 0
  %1176 = vmatpush.bf16.msra.mxu0 0
  %1177 = vmatpush.bf16.msra.mxu0 %v1128
  %1178 = vmatmul.bf16.gmra.mxu0 %v304
  %v1179 = vpop.f32.mrf.mxu0
  %v1180 = vadd.f32 %v1142, %v1179
  %v1181 = vpop.f32.mrf.mxu0
  %v1182 = vadd.f32 %v1144, %v1181
  %1183 = vmatmul.bf16.gmra.mxu0 %v307
  %v1184 = vpop.f32.mrf.mxu0
  %v1185 = vadd.f32 %v1147, %v1184
  %v1186 = vpop.f32.mrf.mxu0
  %v1187 = vadd.f32 %v1149, %v1186
  %1188 = vdwg.mxu0
  %1189 = vmatpush.bf16.msra.mxu0 0
  %1190 = vmatpush.bf16.msra.mxu0 0
  %1191 = vmatpush.bf16.msra.mxu0 0
  %1192 = vmatpush.bf16.msra.mxu0 0
  %1193 = vmatpush.bf16.msra.mxu0 0
  %1194 = vmatpush.bf16.msra.mxu0 0
  %1195 = vmatpush.bf16.msra.mxu0 0
  %1196 = vmatpush.bf16.msra.mxu0 %v1129
  %1197 = vmatmul.bf16.gmra.mxu0 %v304
  %v1198 = vpop.f32.mrf.mxu0
  %v1199 = vadd.f32 %v1161, %v1198
  %v1200 = vpop.f32.mrf.mxu0
  %v1201 = vadd.f32 %v1163, %v1200
  %1202 = vmatmul.bf16.gmra.mxu0 %v307
  %v1203 = vpop.f32.mrf.mxu0
  %v1204 = vadd.f32 %v1166, %v1203
  %v1205 = vpop.f32.mrf.mxu0
  %v1206 = vadd.f32 %v1168, %v1205
  %1207 = vdwg.mxu0
  %v1208 = vmax.f32 %v1180, 0.0
  %v1209 = vmax.f32 %v1199, 0.0
  %v1210 = vmax.f32 %v1182, 0.0
  %v1211 = vmax.f32 %v1201, 0.0
  %v1212 = vmax.f32 %v1185, 0.0
  %v1213 = vmax.f32 %v1204, 0.0
  %v1214 = vmax.f32 %v1187, 0.0
  %v1215 = vmax.f32 %v1206, 0.0
  %v1216 = vpack.c.bf16 %v1210, %v1208
  %v1217 = vpack.c.bf16 %v1211, %v1209
  %v1218 = vpack.c.bf16 %v1214, %v1212
  %v1219 = vpack.c.bf16 %v1215, %v1213
  %v1221 = vperm.slane %v872, 0
  %v1222 = vperm.slane %v872, 1
  %v1257 = vunpack.c.l.b16 %v840
  %v1258 = vunpack.c.h.b16 %v840
  %v1259 = vunpack.c.l.b16 %v841
  %v1260 = vunpack.c.h.b16 %v841
  %v1261 = vunpack.c.l.b16 %v842
  %v1262 = vunpack.c.h.b16 %v842
  %v1263 = vunpack.c.l.b16 %v843
  %v1264 = vunpack.c.h.b16 %v843
  %v1265 = vunpack.c.l.b16 %v844
  %v1266 = vunpack.c.h.b16 %v844
  %v1267 = vunpack.c.l.b16 %v845
  %v1268 = vunpack.c.h.b16 %v845
  %v1269 = vunpack.c.l.b16 %v846
  %v1270 = vunpack.c.h.b16 %v846
  %v1271 = vunpack.c.l.b16 %v847
  %v1272 = vunpack.c.h.b16 %v847
  %v1273 = vunpack.c.l.b16 %v848
  %v1274 = vunpack.c.h.b16 %v848
  %v1275 = vunpack.c.l.b16 %v849
  %v1276 = vunpack.c.h.b16 %v849
  %v1277 = vunpack.c.l.b16 %v850
  %v1278 = vunpack.c.h.b16 %v850
  %v1279 = vunpack.c.l.b16 %v851
  %v1280 = vunpack.c.h.b16 %v851
  %v1281 = vunpack.c.l.b16 %v852
  %v1282 = vunpack.c.h.b16 %v852
  %v1283 = vunpack.c.l.b16 %v853
  %v1284 = vunpack.c.h.b16 %v853
  %v1285 = vunpack.c.l.b16 %v854
  %v1286 = vunpack.c.h.b16 %v854
  %v1287 = vunpack.c.l.b16 %v855
  %v1288 = vunpack.c.h.b16 %v855
  %v1289 = vunpack.c.l.b16 %v856
  %v1290 = vunpack.c.h.b16 %v856
  %v1291 = vunpack.c.l.b16 %v857
  %v1292 = vunpack.c.h.b16 %v857
  %v1293 = vunpack.c.l.b16 %v858
  %v1294 = vunpack.c.h.b16 %v858
  %v1295 = vunpack.c.l.b16 %v859
  %v1296 = vunpack.c.h.b16 %v859
  %v1297 = vunpack.c.l.b16 %v860
  %v1298 = vunpack.c.h.b16 %v860
  %v1299 = vunpack.c.l.b16 %v861
  %v1300 = vunpack.c.h.b16 %v861
  %v1301 = vunpack.c.l.b16 %v862
  %v1302 = vunpack.c.h.b16 %v862
  %v1303 = vunpack.c.l.b16 %v863
  %v1304 = vunpack.c.h.b16 %v863
  %v1305 = vunpack.c.l.b16 %v864
  %v1306 = vunpack.c.h.b16 %v864
  %v1307 = vunpack.c.l.b16 %v865
  %v1308 = vunpack.c.h.b16 %v865
  %v1309 = vunpack.c.l.b16 %v866
  %v1310 = vunpack.c.h.b16 %v866
  %v1311 = vunpack.c.l.b16 %v867
  %v1312 = vunpack.c.h.b16 %v867
  %v1313 = vunpack.c.l.b16 %v868
  %v1314 = vunpack.c.h.b16 %v868
  %v1315 = vunpack.c.l.b16 %v869
  %v1316 = vunpack.c.h.b16 %v869
  %v1317 = vunpack.c.l.b16 %v870
  %v1318 = vunpack.c.h.b16 %v870
  %v1319 = vunpack.c.l.b16 %v871
  %v1320 = vunpack.c.h.b16 %v871
  %v1321 = vpack.c.b16 %v1259, %v1257
  %v1322 = vpack.c.b16 %v1260, %v1258
  %v1323 = vpack.c.b16 %v1263, %v1261
  %v1324 = vpack.c.b16 %v1264, %v1262
  %v1325 = vpack.c.b16 %v1267, %v1265
  %v1326 = vpack.c.b16 %v1268, %v1266
  %v1327 = vpack.c.b16 %v1271, %v1269
  %v1328 = vpack.c.b16 %v1272, %v1270
  %v1329 = vpack.c.b16 %v1275, %v1273
  %v1330 = vpack.c.b16 %v1276, %v1274
  %v1331 = vpack.c.b16 %v1279, %v1277
  %v1332 = vpack.c.b16 %v1280, %v1278
  %v1333 = vpack.c.b16 %v1283, %v1281
  %v1334 = vpack.c.b16 %v1284, %v1282
  %v1335 = vpack.c.b16 %v1287, %v1285
  %v1336 = vpack.c.b16 %v1288, %v1286
  %v1337 = vpack.c.b16 %v1291, %v1289
  %v1338 = vpack.c.b16 %v1292, %v1290
  %v1339 = vpack.c.b16 %v1295, %v1293
  %v1340 = vpack.c.b16 %v1296, %v1294
  %v1341 = vpack.c.b16 %v1299, %v1297
  %v1342 = vpack.c.b16 %v1300, %v1298
  %v1343 = vpack.c.b16 %v1303, %v1301
  %v1344 = vpack.c.b16 %v1304, %v1302
  %v1345 = vpack.c.b16 %v1307, %v1305
  %v1346 = vpack.c.b16 %v1308, %v1306
  %v1347 = vpack.c.b16 %v1311, %v1309
  %v1348 = vpack.c.b16 %v1312, %v1310
  %v1349 = vpack.c.b16 %v1315, %v1313
  %v1350 = vpack.c.b16 %v1316, %v1314
  %v1351 = vpack.c.b16 %v1319, %v1317
  %v1352 = vpack.c.b16 %v1320, %v1318
  %1385 = vmatpush.bf16.msra.mxu0 %v1335
  %1386 = vmatpush.bf16.msra.mxu0 %v1333
  %1387 = vmatpush.bf16.msra.mxu0 %v1331
  %1388 = vmatpush.bf16.msra.mxu0 %v1329
  %1389 = vmatpush.bf16.msra.mxu0 %v1327
  %1390 = vmatpush.bf16.msra.mxu0 %v1325
  %1391 = vmatpush.bf16.msra.mxu0 %v1323
  %1392 = vmatpush.bf16.msra.mxu0 %v1321
  %1393 = vmatmul.bf16.gmra.mxu0 %v1216
  %v1394 = vpop.f32.mrf.mxu0
  %v1395 = vadd.f32 %v1221, %v1394
  %v1396 = vpop.f32.mrf.mxu0
  %v1397 = vadd.f32 %v1221, %v1396
  %1398 = vmatmul.bf16.gmra.mxu0 %v1218
  %v1399 = vpop.f32.mrf.mxu0
  %v1400 = vadd.f32 %v1221, %v1399
  %v1401 = vpop.f32.mrf.mxu0
  %v1402 = vadd.f32 %v1221, %v1401
  %1403 = vdwg.mxu0
  %1404 = vmatpush.bf16.msra.mxu0 %v1351
  %1405 = vmatpush.bf16.msra.mxu0 %v1349
  %1406 = vmatpush.bf16.msra.mxu0 %v1347
  %1407 = vmatpush.bf16.msra.mxu0 %v1345
  %1408 = vmatpush.bf16.msra.mxu0 %v1343
  %1409 = vmatpush.bf16.msra.mxu0 %v1341
  %1410 = vmatpush.bf16.msra.mxu0 %v1339
  %1411 = vmatpush.bf16.msra.mxu0 %v1337
  %1412 = vmatmul.bf16.gmra.mxu0 %v1217
  %v1413 = vpop.f32.mrf.mxu0
  %v1414 = vadd.f32 %v1395, %v1413
  %v1415 = vpop.f32.mrf.mxu0
  %v1416 = vadd.f32 %v1397, %v1415
  %1417 = vmatmul.bf16.gmra.mxu0 %v1219
  %v1418 = vpop.f32.mrf.mxu0
  %v1419 = vadd.f32 %v1400, %v1418
  %v1420 = vpop.f32.mrf.mxu0
  %v1421 = vadd.f32 %v1402, %v1420
  %1422 = vdwg.mxu0
  %1423 = vmatpush.bf16.msra.mxu0 %v1336
  %1424 = vmatpush.bf16.msra.mxu0 %v1334
  %1425 = vmatpush.bf16.msra.mxu0 %v1332
  %1426 = vmatpush.bf16.msra.mxu0 %v1330
  %1427 = vmatpush.bf16.msra.mxu0 %v1328
  %1428 = vmatpush.bf16.msra.mxu0 %v1326
  %1429 = vmatpush.bf16.msra.mxu0 %v1324
  %1430 = vmatpush.bf16.msra.mxu0 %v1322
  %1431 = vmatmul.bf16.gmra.mxu0 %v1216
  %v1432 = vpop.f32.mrf.mxu0
  %v1433 = vadd.f32 %v1222, %v1432
  %v1434 = vpop.f32.mrf.mxu0
  %v1435 = vadd.f32 %v1222, %v1434
  %1436 = vmatmul.bf16.gmra.mxu0 %v1218
  %v1437 = vpop.f32.mrf.mxu0
  %v1438 = vadd.f32 %v1222, %v1437
  %v1439 = vpop.f32.mrf.mxu0
  %v1440 = vadd.f32 %v1222, %v1439
  %1441 = vdwg.mxu0
  %1442 = vmatpush.bf16.msra.mxu0 %v1352
  %1443 = vmatpush.bf16.msra.mxu0 %v1350
  %1444 = vmatpush.bf16.msra.mxu0 %v1348
  %1445 = vmatpush.bf16.msra.mxu0 %v1346
  %1446 = vmatpush.bf16.msra.mxu0 %v1344
  %1447 = vmatpush.bf16.msra.mxu0 %v1342
  %1448 = vmatpush.bf16.msra.mxu0 %v1340
  %1449 = vmatpush.bf16.msra.mxu0 %v1338
  %1450 = vmatmul.bf16.gmra.mxu0 %v1217
  %v1451 = vpop.f32.mrf.mxu0
  %v1452 = vadd.f32 %v1433, %v1451
  %v1453 = vpop.f32.mrf.mxu0
  %v1454 = vadd.f32 %v1435, %v1453
  %1455 = vmatmul.bf16.gmra.mxu0 %v1219
  %v1456 = vpop.f32.mrf.mxu0
  %v1457 = vadd.f32 %v1438, %v1456
  %v1458 = vpop.f32.mrf.mxu0
  %v1459 = vadd.f32 %v1440, %v1458
  %1460 = vdwg.mxu0
  %v1461 = vmax.f32 %v1414, 0.0
  %v1462 = vmax.f32 %v1452, 0.0
  %v1463 = vmax.f32 %v1416, 0.0
  %v1464 = vmax.f32 %v1454, 0.0
  %v1465 = vmax.f32 %v1419, 0.0
  %v1466 = vmax.f32 %v1457, 0.0
  %v1467 = vmax.f32 %v1421, 0.0
  %v1468 = vmax.f32 %v1459, 0.0
  %v1469 = vpack.c.bf16 %v1463, %v1461
  %v1470 = vpack.c.bf16 %v1464, %v1462
  %v1471 = vpack.c.bf16 %v1467, %v1465
  %v1472 = vpack.c.bf16 %v1468, %v1466
  %v1474 = vperm.slane %v905, 0
  %v1475 = vperm.slane %v905, 1
  %v1510 = vunpack.c.l.b16 %v873
  %v1511 = vunpack.c.h.b16 %v873
  %v1512 = vunpack.c.l.b16 %v874
  %v1513 = vunpack.c.h.b16 %v874
  %v1514 = vunpack.c.l.b16 %v875
  %v1515 = vunpack.c.h.b16 %v875
  %v1516 = vunpack.c.l.b16 %v876
  %v1517 = vunpack.c.h.b16 %v876
  %v1518 = vunpack.c.l.b16 %v877
  %v1519 = vunpack.c.h.b16 %v877
  %v1520 = vunpack.c.l.b16 %v878
  %v1521 = vunpack.c.h.b16 %v878
  %v1522 = vunpack.c.l.b16 %v879
  %v1523 = vunpack.c.h.b16 %v879
  %v1524 = vunpack.c.l.b16 %v880
  %v1525 = vunpack.c.h.b16 %v880
  %v1526 = vunpack.c.l.b16 %v881
  %v1527 = vunpack.c.h.b16 %v881
  %v1528 = vunpack.c.l.b16 %v882
  %v1529 = vunpack.c.h.b16 %v882
  %v1530 = vunpack.c.l.b16 %v883
  %v1531 = vunpack.c.h.b16 %v883
  %v1532 = vunpack.c.l.b16 %v884
  %v1533 = vunpack.c.h.b16 %v884
  %v1534 = vunpack.c.l.b16 %v885
  %v1535 = vunpack.c.h.b16 %v885
  %v1536 = vunpack.c.l.b16 %v886
  %v1537 = vunpack.c.h.b16 %v886
  %v1538 = vunpack.c.l.b16 %v887
  %v1539 = vunpack.c.h.b16 %v887
  %v1540 = vunpack.c.l.b16 %v888
  %v1541 = vunpack.c.h.b16 %v888
  %v1542 = vunpack.c.l.b16 %v889
  %v1543 = vunpack.c.h.b16 %v889
  %v1544 = vunpack.c.l.b16 %v890
  %v1545 = vunpack.c.h.b16 %v890
  %v1546 = vunpack.c.l.b16 %v891
  %v1547 = vunpack.c.h.b16 %v891
  %v1548 = vunpack.c.l.b16 %v892
  %v1549 = vunpack.c.h.b16 %v892
  %v1550 = vunpack.c.l.b16 %v893
  %v1551 = vunpack.c.h.b16 %v893
  %v1552 = vunpack.c.l.b16 %v894
  %v1553 = vunpack.c.h.b16 %v894
  %v1554 = vunpack.c.l.b16 %v895
  %v1555 = vunpack.c.h.b16 %v895
  %v1556 = vunpack.c.l.b16 %v896
  %v1557 = vunpack.c.h.b16 %v896
  %v1558 = vunpack.c.l.b16 %v897
  %v1559 = vunpack.c.h.b16 %v897
  %v1560 = vunpack.c.l.b16 %v898
  %v1561 = vunpack.c.h.b16 %v898
  %v1562 = vunpack.c.l.b16 %v899
  %v1563 = vunpack.c.h.b16 %v899
  %v1564 = vunpack.c.l.b16 %v900
  %v1565 = vunpack.c.h.b16 %v900
  %v1566 = vunpack.c.l.b16 %v901
  %v1567 = vunpack.c.h.b16 %v901
  %v1568 = vunpack.c.l.b16 %v902
  %v1569 = vunpack.c.h.b16 %v902
  %v1570 = vunpack.c.l.b16 %v903
  %v1571 = vunpack.c.h.b16 %v903
  %v1572 = vunpack.c.l.b16 %v904
  %v1573 = vunpack.c.h.b16 %v904
  %v1574 = vpack.c.b16 %v1512, %v1510
  %v1575 = vpack.c.b16 %v1513, %v1511
  %v1576 = vpack.c.b16 %v1516, %v1514
  %v1577 = vpack.c.b16 %v1517, %v1515
  %v1578 = vpack.c.b16 %v1520, %v1518
  %v1579 = vpack.c.b16 %v1521, %v1519
  %v1580 = vpack.c.b16 %v1524, %v1522
  %v1581 = vpack.c.b16 %v1525, %v1523
  %v1582 = vpack.c.b16 %v1528, %v1526
  %v1583 = vpack.c.b16 %v1529, %v1527
  %v1584 = vpack.c.b16 %v1532, %v1530
  %v1585 = vpack.c.b16 %v1533, %v1531
  %v1586 = vpack.c.b16 %v1536, %v1534
  %v1587 = vpack.c.b16 %v1537, %v1535
  %v1588 = vpack.c.b16 %v1540, %v1538
  %v1589 = vpack.c.b16 %v1541, %v1539
  %v1590 = vpack.c.b16 %v1544, %v1542
  %v1591 = vpack.c.b16 %v1545, %v1543
  %v1592 = vpack.c.b16 %v1548, %v1546
  %v1593 = vpack.c.b16 %v1549, %v1547
  %v1594 = vpack.c.b16 %v1552, %v1550
  %v1595 = vpack.c.b16 %v1553, %v1551
  %v1596 = vpack.c.b16 %v1556, %v1554
  %v1597 = vpack.c.b16 %v1557, %v1555
  %v1598 = vpack.c.b16 %v1560, %v1558
  %v1599 = vpack.c.b16 %v1561, %v1559
  %v1600 = vpack.c.b16 %v1564, %v1562
  %v1601 = vpack.c.b16 %v1565, %v1563
  %v1602 = vpack.c.b16 %v1568, %v1566
  %v1603 = vpack.c.b16 %v1569, %v1567
  %v1604 = vpack.c.b16 %v1572, %v1570
  %v1605 = vpack.c.b16 %v1573, %v1571
  %1638 = vmatpush.bf16.msra.mxu0 %v1588
  %1639 = vmatpush.bf16.msra.mxu0 %v1586
  %1640 = vmatpush.bf16.msra.mxu0 %v1584
  %1641 = vmatpush.bf16.msra.mxu0 %v1582
  %1642 = vmatpush.bf16.msra.mxu0 %v1580
  %1643 = vmatpush.bf16.msra.mxu0 %v1578
  %1644 = vmatpush.bf16.msra.mxu0 %v1576
  %1645 = vmatpush.bf16.msra.mxu0 %v1574
  %1646 = vmatmul.bf16.gmra.mxu0 %v1469
  %v1647 = vpop.f32.mrf.mxu0
  %v1648 = vadd.f32 %v1474, %v1647
  %v1649 = vpop.f32.mrf.mxu0
  %v1650 = vadd.f32 %v1474, %v1649
  %1651 = vmatmul.bf16.gmra.mxu0 %v1471
  %v1652 = vpop.f32.mrf.mxu0
  %v1653 = vadd.f32 %v1474, %v1652
  %v1654 = vpop.f32.mrf.mxu0
  %v1655 = vadd.f32 %v1474, %v1654
  %1656 = vdwg.mxu0
  %1657 = vmatpush.bf16.msra.mxu0 %v1604
  %1658 = vmatpush.bf16.msra.mxu0 %v1602
  %1659 = vmatpush.bf16.msra.mxu0 %v1600
  %1660 = vmatpush.bf16.msra.mxu0 %v1598
  %1661 = vmatpush.bf16.msra.mxu0 %v1596
  %1662 = vmatpush.bf16.msra.mxu0 %v1594
  %1663 = vmatpush.bf16.msra.mxu0 %v1592
  %1664 = vmatpush.bf16.msra.mxu0 %v1590
  %1665 = vmatmul.bf16.gmra.mxu0 %v1470
  %v1666 = vpop.f32.mrf.mxu0
  %v1667 = vadd.f32 %v1648, %v1666
  %v1668 = vpop.f32.mrf.mxu0
  %v1669 = vadd.f32 %v1650, %v1668
  %1670 = vmatmul.bf16.gmra.mxu0 %v1472
  %v1671 = vpop.f32.mrf.mxu0
  %v1672 = vadd.f32 %v1653, %v1671
  %v1673 = vpop.f32.mrf.mxu0
  %v1674 = vadd.f32 %v1655, %v1673
  %1675 = vdwg.mxu0
  %1676 = vmatpush.bf16.msra.mxu0 %v1589
  %1677 = vmatpush.bf16.msra.mxu0 %v1587
  %1678 = vmatpush.bf16.msra.mxu0 %v1585
  %1679 = vmatpush.bf16.msra.mxu0 %v1583
  %1680 = vmatpush.bf16.msra.mxu0 %v1581
  %1681 = vmatpush.bf16.msra.mxu0 %v1579
  %1682 = vmatpush.bf16.msra.mxu0 %v1577
  %1683 = vmatpush.bf16.msra.mxu0 %v1575
  %1684 = vmatmul.bf16.gmra.mxu0 %v1469
  %v1685 = vpop.f32.mrf.mxu0
  %v1686 = vadd.f32 %v1475, %v1685
  %v1687 = vpop.f32.mrf.mxu0
  %v1688 = vadd.f32 %v1475, %v1687
  %1689 = vmatmul.bf16.gmra.mxu0 %v1471
  %v1690 = vpop.f32.mrf.mxu0
  %v1691 = vadd.f32 %v1475, %v1690
  %v1692 = vpop.f32.mrf.mxu0
  %v1693 = vadd.f32 %v1475, %v1692
  %1694 = vdwg.mxu0
  %1695 = vmatpush.bf16.msra.mxu0 %v1605
  %1696 = vmatpush.bf16.msra.mxu0 %v1603
  %1697 = vmatpush.bf16.msra.mxu0 %v1601
  %1698 = vmatpush.bf16.msra.mxu0 %v1599
  %1699 = vmatpush.bf16.msra.mxu0 %v1597
  %1700 = vmatpush.bf16.msra.mxu0 %v1595
  %1701 = vmatpush.bf16.msra.mxu0 %v1593
  %1702 = vmatpush.bf16.msra.mxu0 %v1591
  %1703 = vmatmul.bf16.gmra.mxu0 %v1470
  %v1704 = vpop.f32.mrf.mxu0
  %v1705 = vadd.f32 %v1686, %v1704
  %v1706 = vpop.f32.mrf.mxu0
  %v1707 = vadd.f32 %v1688, %v1706
  %1708 = vmatmul.bf16.gmra.mxu0 %v1472
  %v1709 = vpop.f32.mrf.mxu0
  %v1710 = vadd.f32 %v1691, %v1709
  %v1711 = vpop.f32.mrf.mxu0
  %v1712 = vadd.f32 %v1693, %v1711
  %1713 = vdwg.mxu0
  %v1714 = vpack.c.bf16 %v1669, %v1667
  %v1715 = vpack.c.bf16 %v1707, %v1705
  %v1716 = vpack.c.bf16 %v1674, %v1672
  %v1717 = vpack.c.bf16 %v1712, %v1710
  %1718 = vmatpush.bf16.msra.mxu0 0
  %1719 = vmatpush.bf16.msra.mxu0 0
  %1720 = vmatpush.bf16.msra.mxu0 0
  %1721 = vmatpush.bf16.msra.mxu0 0
  %1722 = vmatpush.bf16.msra.mxu0 0
  %1723 = vmatpush.bf16.msra.mxu0 0
  %1724 = vmatpush.bf16.msra.mxu0 %v1716
  %1725 = vmatpush.bf16.msra.mxu0 %v1714
  %1726 = vmatmul.bf16.gmra.mxu0 %v449
  %v1727 = vpop.f32.mrf.mxu0
  %v1728 = vadd.f32 0.0, %v1727
  %v1729 = vpop.f32.mrf.mxu0
  %v1730 = vadd.f32 0.0, %v1729
  %1731 = vdwg.mxu0
  %1732 = vmatpush.bf16.msra.mxu0 0
  %1733 = vmatpush.bf16.msra.mxu0 0
  %1734 = vmatpush.bf16.msra.mxu0 0
  %1735 = vmatpush.bf16.msra.mxu0 0
  %1736 = vmatpush.bf16.msra.mxu0 0
  %1737 = vmatpush.bf16.msra.mxu0 0
  %1738 = vmatpush.bf16.msra.mxu0 %v1717
  %1739 = vmatpush.bf16.msra.mxu0 %v1715
  %1740 = vmatmul.bf16.gmra.mxu0 %v449
  %v1741 = vpop.f32.mrf.mxu0
  %v1742 = vadd.f32 0.0, %v1741
  %v1743 = vpop.f32.mrf.mxu0
  %v1744 = vadd.f32 0.0, %v1743
  %1745 = vdwg.mxu0
  %v1746 = vld [vmem:[%s9] sm:$0x3]
  %v1748 = vsel %vm238, %v1746, 0
  %1750 = vmatpush.msra.mxu0 0.0
  %1751 = vmatpush.msra.mxu0 0.0
  %1752 = vmatpush.msra.mxu0 0.0
  %1753 = vmatpush.msra.mxu0 0.0
  %1754 = vmatpush.msra.mxu0 0.0
  %1755 = vmatpush.msra.mxu0 0.0
  %1756 = vmatpush.msra.mxu0 0.0
  %1757 = vmatpush.msra.mxu0 0.0
  %1758 = vmatpush.msra.mxu0 0.0
  %1759 = vmatpush.msra.mxu0 0.0
  %1760 = vmatpush.msra.mxu0 0.0
  %1761 = vmatpush.msra.mxu0 0.0
  %1762 = vmatpush.msra.mxu0 0.0
  %1763 = vmatpush.msra.mxu0 0.0
  %1764 = vmatpush.msra.mxu0 %v1730
  %1765 = vmatpush.msra.mxu0 %v1728
  %1766 = vmatmul.f32.gmra.mxu0 %v1748
  %v1767 = vpop.f32.mrf.mxu0
  %v1768 = vadd.f32 0.0, %v1767
  %1769 = vdwg.mxu0
  %1770 = vmatpush.msra.mxu0 0.0
  %1771 = vmatpush.msra.mxu0 0.0
  %1772 = vmatpush.msra.mxu0 0.0
  %1773 = vmatpush.msra.mxu0 0.0
  %1774 = vmatpush.msra.mxu0 0.0
  %1775 = vmatpush.msra.mxu0 0.0
  %1776 = vmatpush.msra.mxu0 0.0
  %1777 = vmatpush.msra.mxu0 0.0
  %1778 = vmatpush.msra.mxu0 0.0
  %1779 = vmatpush.msra.mxu0 0.0
  %1780 = vmatpush.msra.mxu0 0.0
  %1781 = vmatpush.msra.mxu0 0.0
  %1782 = vmatpush.msra.mxu0 0.0
  %1783 = vmatpush.msra.mxu0 0.0
  %1784 = vmatpush.msra.mxu0 %v1744
  %1785 = vmatpush.msra.mxu0 %v1742
  %1786 = vmatmul.f32.gmra.mxu0 %v1748
  %v1787 = vpop.f32.mrf.mxu0
  %v1788 = vadd.f32 0.0, %v1787
  %1789 = vdwg.mxu0
  %v1790 = vld [vmem:[%s53] sm:$0xff]
  %v1791 = vld [vmem:[%s53 + $0x8] sm:$0xff]
  %v1792 = vld [vmem:[%s53 + $0x10] sm:$0xff]
  %v1793 = vld [vmem:[%s53 + $0x18] sm:$0xff]
  %v1794 = vld [vmem:[%s53 + $0x20] sm:$0xff]
  %v1795 = vld [vmem:[%s53 + $0x28] sm:$0xff]
  %v1796 = vld [vmem:[%s53 + $0x30] sm:$0xff]
  %v1797 = vld [vmem:[%s53 + $0x38] sm:$0xff]
  %v1798 = vld [vmem:[%s53 + $0x40] sm:$0xff]
  %v1799 = vld [vmem:[%s53 + $0x48] sm:$0xff]
  %v1800 = vld [vmem:[%s53 + $0x50] sm:$0xff]
  %v1801 = vld [vmem:[%s53 + $0x58] sm:$0xff]
  %v1802 = vld [vmem:[%s53 + $0x60] sm:$0xff]
  %v1803 = vld [vmem:[%s53 + $0x68] sm:$0xff]
  %v1804 = vld [vmem:[%s53 + $0x70] sm:$0xff]
  %v1805 = vld [vmem:[%s53 + $0x78] sm:$0xff]
  %v1806 = vld [vmem:[%s53 + $0x80] sm:$0xff]
  %v1807 = vld [vmem:[%s53 + $0x88] sm:$0xff]
  %v1808 = vld [vmem:[%s53 + $0x90] sm:$0xff]
  %v1809 = vld [vmem:[%s53 + $0x98] sm:$0xff]
  %v1810 = vld [vmem:[%s53 + $0xa0] sm:$0xff]
  %v1811 = vld [vmem:[%s53 + $0xa8] sm:$0xff]
  %v1812 = vld [vmem:[%s53 + $0xb0] sm:$0xff]
  %v1813 = vld [vmem:[%s53 + $0xb8] sm:$0xff]
  %v1814 = vld [vmem:[%s53 + $0xc0] sm:$0xff]
  %v1815 = vld [vmem:[%s53 + $0xc8] sm:$0xff]
  %v1816 = vld [vmem:[%s53 + $0xd0] sm:$0xff]
  %v1817 = vld [vmem:[%s53 + $0xd8] sm:$0xff]
  %v1818 = vld [vmem:[%s53 + $0xe0] sm:$0xff]
  %v1819 = vld [vmem:[%s53 + $0xe8] sm:$0xff]
  %v1820 = vld [vmem:[%s53 + $0xf0] sm:$0xff]
  %v1821 = vld [vmem:[%s53 + $0xf8] sm:$0xff]
  %v1822 = vld [vmem:[%s55] sm:$0x1]
  %v1824 = vperm.slane %v1822, 0
  %1826 = vmatpush.msra.mxu0 %v1805
  %1827 = vmatpush.msra.mxu0 %v1804
  %1828 = vmatpush.msra.mxu0 %v1803
  %1829 = vmatpush.msra.mxu0 %v1802
  %1830 = vmatpush.msra.mxu0 %v1801
  %1831 = vmatpush.msra.mxu0 %v1800
  %1832 = vmatpush.msra.mxu0 %v1799
  %1833 = vmatpush.msra.mxu0 %v1798
  %1834 = vmatpush.msra.mxu0 %v1797
  %1835 = vmatpush.msra.mxu0 %v1796
  %1836 = vmatpush.msra.mxu0 %v1795
  %1837 = vmatpush.msra.mxu0 %v1794
  %1838 = vmatpush.msra.mxu0 %v1793
  %1839 = vmatpush.msra.mxu0 %v1792
  %1840 = vmatpush.msra.mxu0 %v1791
  %1841 = vmatpush.msra.mxu0 %v1790
  %1842 = vmatmul.f32.gmra.mxu0 %v1768
  %v1843 = vpop.f32.mrf.mxu0
  %v1844 = vadd.f32 %v1824, %v1843
  %1845 = vdwg.mxu0
  %1846 = vmatpush.msra.mxu0 %v1821
  %1847 = vmatpush.msra.mxu0 %v1820
  %1848 = vmatpush.msra.mxu0 %v1819
  %1849 = vmatpush.msra.mxu0 %v1818
  %1850 = vmatpush.msra.mxu0 %v1817
  %1851 = vmatpush.msra.mxu0 %v1816
  %1852 = vmatpush.msra.mxu0 %v1815
  %1853 = vmatpush.msra.mxu0 %v1814
  %1854 = vmatpush.msra.mxu0 %v1813
  %1855 = vmatpush.msra.mxu0 %v1812
  %1856 = vmatpush.msra.mxu0 %v1811
  %1857 = vmatpush.msra.mxu0 %v1810
  %1858 = vmatpush.msra.mxu0 %v1809
  %1859 = vmatpush.msra.mxu0 %v1808
  %1860 = vmatpush.msra.mxu0 %v1807
  %1861 = vmatpush.msra.mxu0 %v1806
  %1862 = vmatmul.f32.gmra.mxu0 %v1788
  %v1863 = vpop.f32.mrf.mxu0
  %v1864 = vadd.f32 %v1844, %v1863
  %1865 = vdwg.mxu0
  %v1866 = vld [vmem:[%s57] sm:$0x1]
  %v1868 = vperm.slane %v1866, 0
  %v1870 = vmul.f32 %v1864, %v1868
  %vm1871 = vcmask 517120
  %v1872 = vsel %vm1871, %v1870, 0.0
  %1873 = vadd.xlane.f32.xlu0 %v1872
  %v1874 = vpop.xlane.xlu0 %1873
  %v1875 = vld [vmem:[#allocation2] sm:$0x1]
  %v1877 = vperm.slane %v1875, 0
  %v1879 = vadd.f32 %v1874, %v1877
  %v1880 = vxor.u32 %v1879, 2147483648
  %v1881 = vmul.f32 %v1880, 1.442695
  %v1882 = vpow.pop %v1881
  %v1883 = vadd.f32 %v1882, 1.0
  %v1884 = vrcp.pop %v1883
  %v1885 = vmul.f32 %v1883, %v1884
  %v1886 = vsub.f32 1.0, %v1885
  %v1887 = vmul.f32 %v1884, %v1886
  %v1888 = vadd.f32 %v1884, %v1887
  %vm1889 = vweird.f32 %v1883
  %vm1890 = vweird.f32 %v1884
  %vm1891 = vmor %vm1889, %vm1890
  %v1892 = vsel %vm1891, %v1884, %v1888
  %v1893 = vand.u32 2147483647, %v1883
  %vm1894 = vcmp.eq.f32.partialorder %v1893, 8.507059e+37
  %v1895 = vand.u32 %v1883, 2147483648
  %v1896 = vor.u32 1.1754944e-38, %v1895
  %v1897 = vsel %vm1894, %v1896, %v1892
  %v1898 = vmul.f32 1.0, %v1897
  %vm1899 = vcmask 1024
  %1900 = vst.msk [vmem:[%s61] sm:$0x3] %vm1899, %v1898
  // Predicated region
  $region122: #{net_forward.1} parent=0 // pred_check
    _
  $region123: #{net_forward.1} parent=0 // pred_check_branch
    %1902 = sbr.rel (0) target = $region125
  $region124: #{net_forward.1} parent=0 // pred_region
    _
  $region125: #{net_forward.1} parent=0 // pred_fallthru
    _
  // Predicated region
  $region126: #{net_forward.1} parent=0 // pred_check
    _
  $region127: #{net_forward.1} parent=0 // pred_check_branch
    %1904 = sbr.rel (0) target = $region129
  $region128: #{net_forward.1} parent=0 // pred_region
    _
  $region129: #{net_forward.1} parent=0 // pred_fallthru
    _

</llo_original>
